<compile_context>
chip_gen: v6e
topology: v6e:2x2x1
jax: 0.10.0
libtpu: 0.0.40
codegen_flags: <defaults>
</compile_context>

<pallas_src>
import numpy as np
import jax
import jax.numpy as jnp
from jax import lax
from jax.experimental import pallas as pl
from jax.experimental.pallas import tpu as pltpu

# --- configuration (small shapes consistent with GSPredictor / Options) ------
BSZ = 2            # batch size
NUM_VIEWS = 2      # opt.num_input_views (cond_num)
IN_CH = 3          # opt.plucker_ray == False -> 3 input channels
INPUT_SIZE = 16    # opt.input_size
PATCH = 8          # opt.patch_size
GAMBA_DIM = 32     # opt.gamba_dim == transformer_dim == decoder mlp_dim
MLP_HIDDEN = 4 * GAMBA_DIM
N_COORD_BINS = 21
POS_BOUND = 0.8
INIT_DENSITY = 0.1
N_QUAT = 32
OUT_GS_DIM = 3 + 1 + 3 + 4 + 3     # xyz, opacity, scale, quat, rgb = 14
HEAD_PAD = 128                     # lane-dense head / output block width

# Set to jnp.bfloat16 on v6e/v7x (native bf16 MXU, half the weight/activation
# stream bytes).  Kept f32 here so the check against the f32 reference is tight.
MATMUL_DTYPE = jnp.float32

# v-lane layout of the packed (D, 128) head matmul.  Direct-activation heads
# (opacity / scale / rgb) sit at their FINAL output lanes; rot / xyz logits sit
# in spare lanes and are mixed into output lanes 7:11 / 0:3 by the (128,128)
# head-mix matmul.
OP_LANE = 3                        # opacity logit & output lane
SC_LANE = 4                        # scale logits & output lanes 4:7
ROT_OUT_LANE = 7                   # quaternion output lanes 7:11
RGB_LANE = 11                      # rgb logits & output lanes 11:14
ROT_IN_OFF = 32                    # rot logits lanes 32:64
XYZ_IN_OFF = 64                    # xyz logits lanes 64:127 (x|y|z, 3*21)

_C = 0.7071
CANONICAL_QUATS = np.array([
    [1, 0, 0, 0], [0, 1, 0, 0], [0, 0, 1, 0], [0, 0, 0, 1],
    [-1, 0, 0, 0], [0, -1, 0, 0], [0, 0, -1, 0], [0, 0, 0, -1],
    [_C, _C, 0, 0], [_C, 0, _C, 0], [_C, 0, 0, _C],
    [0, _C, _C, 0], [0, _C, 0, _C], [0, 0, _C, _C],
    [_C, -_C, 0, 0], [_C, 0, -_C, 0], [_C, 0, 0, -_C],
    [0, _C, -_C, 0], [0, _C, 0, -_C], [0, 0, _C, -_C],
    [-_C, _C, 0, 0], [-_C, 0, _C, 0], [-_C, 0, 0, _C],
    [0, -_C, _C, 0], [0, -_C, 0, _C], [0, 0, -_C, _C],
    [-_C, -_C, 0, 0], [-_C, 0, -_C, 0], [-_C, 0, 0, -_C],
    [0, -_C, -_C, 0], [0, -_C, 0, -_C], [0, 0, -_C, -_C],
], dtype=np.float32)


# ------------------------------- small math ---------------------------------
def _sigmoid_exact(x):
    return 1.0 / (1.0 + jnp.exp(-x))


def _silu(x):
    return x * _sigmoid_exact(x)


def _softplus(x):  # numerically stable log(1 + exp(x))
    return jnp.maximum(x, 0.0) + jnp.log(1.0 + jnp.exp(-jnp.abs(x)))


# --------------------------- fused Pallas kernel -----------------------------
def _gs_fused_kernel(p_ref, wp_ref, bp_ref, w1_ref, b1_ref, w2_ref, b2_ref,
                     wh_ref, bh_ref, hm_ref, o_ref):
    def mm(a, w_ref):
        return jnp.dot(a.astype(MATMUL_DTYPE), w_ref[...],
                       preferred_element_type=jnp.float32)

    # ---- patch embedding (Conv2d k=stride=PATCH) + GSDecoder.mlp_net --------
    x = mm(p_ref[...], wp_ref) + bp_ref[...]                       # (TM, D)
    h = _silu(mm(x, w1_ref) + b1_ref[...])                         # (TM, 4D)
    f = _silu(mm(h, w2_ref) + b2_ref[...])                         # (TM, D)

    # ---- all five gaussian heads: one lane-dense (D, 128) matmul ------------
    v = mm(f, wh_ref) + bh_ref[...]                                # (TM, 128)

    # ---- per-lane masks (trace-time constants) ------------------------------
    lane = lax.broadcasted_iota(jnp.int32, (1, HEAD_PAD), 1)
    xyz_out = lane < 3
    sig_out = (lane == OP_LANE) | ((lane >= RGB_LANE) & (lane < RGB_LANE + 3))
    sp_out = (lane >= SC_LANE) & (lane < SC_LANE + 3)
    rot_out = (lane >= ROT_OUT_LANE) & (lane < ROT_OUT_LANE + 4)
    rot_in = (lane >= ROT_IN_OFF) & (lane < ROT_IN_OFF + N_QUAT)
    gx = (lane >= XYZ_IN_OFF) & (lane < XYZ_IN_OFF + N_COORD_BINS)
    gy = (lane >= XYZ_IN_OFF + N_COORD_BINS) & (lane < XYZ_IN_OFF + 2 * N_COORD_BINS)
    gz = (lane >= XYZ_IN_OFF + 2 * N_COORD_BINS) & (lane < XYZ_IN_OFF + 3 * N_COORD_BINS)
    soft_in = rot_in | gx | gy | gz
    neg = jnp.float32(-1e30)

    # ---- softmax numerators: PER-GROUP maxima (masked), one full-width exp --
    def gmax(m):
        return jnp.max(jnp.where(m, v, neg), axis=-1, keepdims=True)

    mlanes = jnp.where(gx, gmax(gx),
             jnp.where(gy, gmax(gy),
             jnp.where(gz, gmax(gz),
             jnp.where(rot_in, gmax(rot_in), 0.0))))
    e = jnp.exp(jnp.where(soft_in, v - mlanes, neg))               # exact 0 off-group

    # xyz expectation numerators land at output lanes 0:3, quaternion mixture
    # at output lanes 7:11; extra MXU columns are free (N padded to 128/256).
    nd = mm(e, hm_ref)                                             # (TM, 128)

    # ---- xyz: per-axis denominators (masked sums, always >= 1), divide ------
    def gsum(m):
        return jnp.sum(jnp.where(m, e, 0.0), axis=-1, keepdims=True)

    den = jnp.where(lane == 0, gsum(gx),
          jnp.where(lane == 1, gsum(gy),
          jnp.where(lane == 2, gsum(gz), 1.0)))
    xyz_full = nd * pl.reciprocal(den, approx=True)

    # ---- rotation: normalize the canonical-quaternion mixture (lanes 7:11) --
    # F.normalize is scale-invariant, so the rot softmax denominator is skipped.
    qn = jnp.sum(jnp.where(rot_out, nd * nd, 0.0), axis=-1, keepdims=True)
    rot_full = nd * lax.rsqrt(jnp.maximum(qn, 1e-24))

    # ---- direct heads, full width: sigmoid (opacity/rgb), 0.1*softplus ------
    sig_full = pl.reciprocal(1.0 + jnp.exp(-v), approx=True)
    sp_full = 0.1 * _softplus(v)

    # ---- lane-dense assembly (vselects) + ONE unmasked store ----------------
    out = jnp.where(xyz_out, xyz_full,
          jnp.where(rot_out, rot_full,
          jnp.where(sig_out, sig_full,
          jnp.where(sp_out, sp_full, 0.0))))
    o_ref[...] = out


# ------------------------- parameter packing helpers -------------------------
def _pack_head_params(P):
    """All five head projections as one lane-dense (D, 128) weight + bias."""
    wh = jnp.zeros((GAMBA_DIM, HEAD_PAD), jnp.float32)
    bh = jnp.zeros((HEAD_PAD,), jnp.float32)
    for w, b, off in ((P['wop'], P['bop'], OP_LANE),
                      (P['wsc'], P['bsc'], SC_LANE),
                      (P['wrgb'], P['brgb'], RGB_LANE),
                      (P['wrot'], P['brot'], ROT_IN_OFF),
                      (P['wxyz'], P['bxyz'], XYZ_IN_OFF)):
        n = w.shape[1]
        wh = wh.at[:, off:off + n].set(w)
        bh = bh.at[off:off + n].set(b)
    return wh, bh.reshape(1, HEAD_PAD)


def _make_head_mix(P):
    """(128,128) mixing matrix: xyz-logit rows carry the block-diagonal
    coordinate bins into output lanes 0:3; rot-logit rows carry the canonical
    quaternions into output lanes 7:11.  All other entries are zero."""
    hm = jnp.zeros((HEAD_PAD, HEAD_PAD), jnp.float32)
    for g in range(3):
        r0 = XYZ_IN_OFF + g * N_COORD_BINS
        hm = hm.at[r0:r0 + N_COORD_BINS, g].set(P['coords'][g])
    hm = hm.at[ROT_IN_OFF:ROT_IN_OFF + N_QUAT,
               ROT_OUT_LANE:ROT_OUT_LANE + 4].set(P['quats'])
    return hm


# ------------------------------ Pallas wrapper -------------------------------
def _pick_tile(T):
    """Token rows per grid step: multiple of 8, >= 2 steps when possible (v7x
    shards the 'parallel' axis across its 2 TensorCores), capped at 512 rows
    (per-step overhead amortized; ~1.3 MiB/step double-buffered at 512 rows)."""
    if T <= 8 or T % 8 != 0:
        return T
    tile = min(512, max(8, (T // 2) - (T // 2) % 8))
    while T % tile:
        tile -= 8
    return tile


def gs_fused_pallas(patches, P):
    T, KP = patches.shape
    D = GAMBA_DIM
    wh, bh = _pack_head_params(P)
    hm = _make_head_mix(P)

    # bf16 operand stream on v6e/v7x; no-op at the default f32.
    patches = patches.astype(MATMUL_DTYPE)
    wp = P['wp'].astype(MATMUL_DTYPE)
    w1 = P['w1'].astype(MATMUL_DTYPE)
    w2 = P['w2'].astype(MATMUL_DTYPE)
    whc = wh.astype(MATMUL_DTYPE)
    hmc = hm.astype(MATMUL_DTYPE)

    tile = _pick_tile(T)
    assert T % tile == 0
    n_tiles = T // tile

    def full(a):  # weight / bias resident across all grid steps
        return pl.BlockSpec(a.shape, lambda i: (0,) * a.ndim)

    args = (patches,
            wp, P['bp'].reshape(1, D),
            w1, P['b1'].reshape(1, MLP_HIDDEN),
            w2, P['b2'].reshape(1, D),
            whc, bh, hmc)
    in_specs = [pl.BlockSpec((tile, KP), lambda i: (i, 0))]
    in_specs += [full(a) for a in args[1:]]

    return pl.pallas_call(
        _gs_fused_kernel,
        out_shape=jax.ShapeDtypeStruct((T, HEAD_PAD), jnp.float32),
        grid=(n_tiles,),
        in_specs=in_specs,
        out_specs=pl.BlockSpec((tile, HEAD_PAD), lambda i: (i, 0)),
        compiler_params=pltpu.CompilerParams(
            dimension_semantics=("parallel",)),
    )(*args)


# ------------------------------ parameters -----------------------------------
def init_params(key):
    ks = jax.random.split(key, 8)

    def xavier(k, shape):
        fan_in, fan_out = shape
        lim = float(np.sqrt(6.0 / (fan_in + fan_out)))
        return jax.random.uniform(k, shape, jnp.float32, -lim, lim)

    Kp = IN_CH * PATCH * PATCH
    coords = jnp.tile(jnp.linspace(-POS_BOUND, POS_BOUND, N_COORD_BINS,
                                   dtype=jnp.float32)[None, :], (3, 1))
    return {
        # map_image (Conv2d patchify), trunc-normal-ish: std = sqrt(1/fan_in)
        'wp': jax.random.normal(ks[0], (Kp, GAMBA_DIM), jnp.float32) * float(np.sqrt(1.0 / Kp)),
        'bp': jnp.zeros((GAMBA_DIM,), jnp.float32),
        # GSDecoder.mlp_net
        'w1': xavier(ks[1], (GAMBA_DIM, MLP_HIDDEN)),
        'b1': jnp.zeros((MLP_HIDDEN,), jnp.float32),
        'w2': xavier(ks[2], (MLP_HIDDEN, GAMBA_DIM)),
        'b2': jnp.zeros((GAMBA_DIM,), jnp.float32),
        # heads
        'wxyz': xavier(ks[3], (GAMBA_DIM, 3 * N_COORD_BINS)),
        'bxyz': jnp.zeros((3 * N_COORD_BINS,), jnp.float32),
        'wop': xavier(ks[4], (GAMBA_DIM, 1)),
        'bop': jnp.full((1,), float(np.log(INIT_DENSITY / (1.0 - INIT_DENSITY))), jnp.float32),
        'wsc': xavier(ks[5], (GAMBA_DIM, 3)),
        'bsc': jnp.full((3,), -1.8, jnp.float32),
        'wrot': xavier(ks[6], (GAMBA_DIM, N_QUAT)),
        'brot': jnp.zeros((N_QUAT,), jnp.float32),
        'wrgb': xavier(ks[7], (GAMBA_DIM, 3)),
        'brgb': jnp.zeros((3,), jnp.float32),
        # buffers
        'coords': coords,
        'quats': jnp.asarray(CANONICAL_QUATS, jnp.float32),
    }


# ------------------------------- forward pass --------------------------------
def _make_scan_index(bsz_cn, Hp, Wp):
    """Row-gather index realizing the 4 mamba scan orders (flatten / transpose
    / flip / transpose+flip) over the unique (h, w) patch tokens."""
    hw = np.arange(Hp * Wp).reshape(Hp, Wp)
    scan = np.concatenate([hw.reshape(-1), hw.T.reshape(-1),
                           hw[:, ::-1].reshape(-1), hw.T[:, ::-1].reshape(-1)])
    idx = (np.arange(bsz_cn)[:, None] * (Hp * Wp) + scan[None, :]).reshape(-1)
    return jnp.asarray(idx, jnp.int32)


def gs_predictor_forward(cond_views, P):
    bsz, cn, c, h, w = cond_views.shape
    Hp, Wp = h // PATCH, w // PATCH

    # map_image: Conv2d(k=stride=PATCH) == im2col; the matmul itself is fused
    # into the decoder kernel below.
    x = cond_views.reshape(bsz * cn, c, h, w)
    patches = x.reshape(bsz * cn, c, Hp, PATCH, Wp, PATCH)
    patches = patches.transpose(0, 2, 4, 1, 3, 5).reshape(
        bsz * cn * Hp * Wp, c * PATCH * PATCH).astype(jnp.float32)

    # TODO(synk): GambaFormer (mamba transformer backbone) is not provided in
    # the reference source and is stood in by identity.  With that stand-in the
    # 4 scan orders are pure row duplication, so the fused decoder runs once
    # per UNIQUE patch token and the 14-lane output is gathered into scan order
    # below (no 4x-duplicated 32-wide feature tensor in HBM).  With a real
    # GambaFormer, duplicate before the transformer and feed its output through
    # the decoder kernel via a scalar-prefetch row gather instead.
    out_padded = gs_fused_pallas(patches, P)            # (T_unique, 128)

    # reshape_upsample with upsampler_type == 'none' is a no-op.
    # Scan-order duplication on the 14 useful output lanes; the :14 slice fuses
    # into the gather (no separate padded-buffer copy).
    idx = _make_scan_index(bsz * cn, Hp, Wp)
    gs = jnp.take(out_padded, idx, axis=0)[:, :OUT_GS_DIM]
    return {'pred_gs': gs.reshape(bsz, -1, OUT_GS_DIM)}


# --------------------------- pure-JAX reference ------------------------------
def _scan_tokens(emb, bsz_cn, Hp, Wp):
    """Faithful port of the torch scan-order construction (NHWC emb)."""
    s1 = emb.reshape(bsz_cn, Hp * Wp, GAMBA_DIM)
    s2 = emb.transpose(0, 2, 1, 3).reshape(bsz_cn, Wp * Hp, GAMBA_DIM)
    s3 = emb[:, :, ::-1, :].reshape(bsz_cn, Hp * Wp, GAMBA_DIM)
    s4 = emb.transpose(0, 2, 1, 3)[:, :, ::-1, :].reshape(bsz_cn, Wp * Hp, GAMBA_DIM)
    return jnp.concatenate([s1, s2, s3, s4], axis=1)


def reference_forward(cond_views, P):
    bsz, cn, c, h, w = cond_views.shape
    Hp, Wp = h // PATCH, w // PATCH
    x = cond_views.reshape(bsz * cn, c, h, w)
    patches = x.reshape(bsz * cn, c, Hp, PATCH, Wp, PATCH)
    patches = patches.transpose(0, 2, 4, 1, 3, 5).reshape(-1, c * PATCH * PATCH)

    def dot(a, b):
        return jnp.dot(a, b, precision='highest')

    emb = (dot(patches.astype(jnp.float32), P['wp']) + P['bp']).reshape(
        bsz * cn, Hp, Wp, GAMBA_DIM)
    feats = _scan_tokens(emb, bsz * cn, Hp, Wp).reshape(bsz, -1, GAMBA_DIM)

    hid = _silu(dot(feats, P['w1']) + P['b1'])
    f = _silu(dot(hid, P['w2']) + P['b2'])

    vx = (dot(f, P['wxyz']) + P['bxyz']).reshape(bsz, -1, 3, N_COORD_BINS)
    prob = jax.nn.softmax(vx, axis=-1)
    xyz = jnp.sum(prob * P['coords'][None, None], axis=-1)

    opacity = jax.nn.sigmoid(dot(f, P['wop']) + P['bop'])
    scale = 0.1 * _softplus(dot(f, P['wsc']) + P['bsc'])

    pr = jax.nn.softmax(dot(f, P['wrot']) + P['brot'], axis=-1)
    q = jnp.sum(pr[..., None] * P['quats'][None, None], axis=-2)
    rot = q / jnp.maximum(jnp.linalg.norm(q, axis=-1, keepdims=True), 1e-12)

    rgb = jax.nn.sigmoid(dot(f, P['wrgb']) + P['brgb'])
    return jnp.concatenate([xyz, opacity, scale, rot, rgb], axis=-1)


# ----------------------------------- main ------------------------------------
if __name__ == "__main__":
    key = jax.random.PRNGKey(0)
    kp, kx = jax.random.split(key)
    P = init_params(kp)

    cond_views = jax.random.normal(
        kx, (BSZ, NUM_VIEWS, IN_CH, INPUT_SIZE, INPUT_SIZE), jnp.float32)

    fwd = jax.jit(lambda cv: gs_predictor_forward(cv, P))
    out = fwd(cond_views)
    gs = jax.block_until_ready(out['pred_gs'])

    ref = np.asarray(reference_forward(cond_views, P))
    got = np.asarray(gs)
    assert got.shape == (BSZ, NUM_VIEWS * 4 * (INPUT_SIZE // PATCH) ** 2, OUT_GS_DIM), got.shape
    if not np.allclose(got, ref, atol=1e-2, rtol=1e-2):
        raise AssertionError(
            f"Pallas output mismatch, max abs diff = {np.abs(got - ref).max()}")

    print("KERNEL_OK")
</pallas_src>

<mosaic_0001>
module attributes {stable_mosaic.version = 11 : i64} {
  func.func @_gs_fused_kernel(%arg0: i32, %arg1: memref<8x192xf32, #tpu.memory_space<vmem>>, %arg2: memref<192x32xf32, #tpu.memory_space<vmem>>, %arg3: memref<1x32xf32, #tpu.memory_space<vmem>>, %arg4: memref<32x128xf32, #tpu.memory_space<vmem>>, %arg5: memref<1x128xf32, #tpu.memory_space<vmem>>, %arg6: memref<128x32xf32, #tpu.memory_space<vmem>>, %arg7: memref<1x32xf32, #tpu.memory_space<vmem>>, %arg8: memref<32x128xf32, #tpu.memory_space<vmem>>, %arg9: memref<1x128xf32, #tpu.memory_space<vmem>>, %arg10: memref<128x128xf32, #tpu.memory_space<vmem>>, %arg11: memref<8x128xf32, #tpu.memory_space<vmem>>) attributes {dimension_semantics = [#tpu.dimension_semantics<parallel>], iteration_bounds = array<i64: 2>, scalar_prefetch = 0 : i64, scratch_operands = 0 : i64, tpu.core_type = #tpu.core_type<tc>, window_params = [{transform_indices = @transform_0, window_bounds = array<i64: 8, 192>}, {pipeline_mode = #tpu.pipeline_mode<synchronous>, transform_indices = @transform_1, window_bounds = array<i64: 192, 32>}, {pipeline_mode = #tpu.pipeline_mode<synchronous>, transform_indices = @transform_2, window_bounds = array<i64: 1, 32>}, {pipeline_mode = #tpu.pipeline_mode<synchronous>, transform_indices = @transform_3, window_bounds = array<i64: 32, 128>}, {pipeline_mode = #tpu.pipeline_mode<synchronous>, transform_indices = @transform_4, window_bounds = array<i64: 1, 128>}, {pipeline_mode = #tpu.pipeline_mode<synchronous>, transform_indices = @transform_5, window_bounds = array<i64: 128, 32>}, {pipeline_mode = #tpu.pipeline_mode<synchronous>, transform_indices = @transform_6, window_bounds = array<i64: 1, 32>}, {pipeline_mode = #tpu.pipeline_mode<synchronous>, transform_indices = @transform_7, window_bounds = array<i64: 32, 128>}, {pipeline_mode = #tpu.pipeline_mode<synchronous>, transform_indices = @transform_8, window_bounds = array<i64: 1, 128>}, {pipeline_mode = #tpu.pipeline_mode<synchronous>, transform_indices = @transform_9, window_bounds = array<i64: 128, 128>}, {transform_indices = @transform_10, window_bounds = array<i64: 8, 128>}]} {
    %c0 = arith.constant 0 : index
    %c0_0 = arith.constant 0 : index
    %0 = vector.load %arg1[%c0, %c0_0] : memref<8x192xf32, #tpu.memory_space<vmem>>, vector<8x192xf32>
    %c0_1 = arith.constant 0 : index
    %c0_2 = arith.constant 0 : index
    %1 = vector.load %arg2[%c0_1, %c0_2] : memref<192x32xf32, #tpu.memory_space<vmem>>, vector<192x32xf32>
    %cst = arith.constant dense<0.000000e+00> : vector<8x32xf32>
    %2 = tpu.matmul %0, %1, %cst {dimension_numbers = #tpu.dot_dimension_numbers<[1], [0], [0], [1], [0, 0, 1, 1], [], []>} : vector<8x192xf32>, vector<192x32xf32>, vector<8x32xf32> -> vector<8x32xf32>
    %c0_3 = arith.constant 0 : index
    %c0_4 = arith.constant 0 : index
    %3 = vector.load %arg3[%c0_3, %c0_4] : memref<1x32xf32, #tpu.memory_space<vmem>>, vector<1x32xf32>
    %4 = vector.broadcast %3 : vector<1x32xf32> to vector<8x32xf32>
    %5 = arith.addf %2, %4 : vector<8x32xf32>
    %c0_5 = arith.constant 0 : index
    %c0_6 = arith.constant 0 : index
    %6 = vector.load %arg4[%c0_5, %c0_6] : memref<32x128xf32, #tpu.memory_space<vmem>>, vector<32x128xf32>
    %cst_7 = arith.constant dense<0.000000e+00> : vector<8x128xf32>
    %7 = tpu.matmul %5, %6, %cst_7 {dimension_numbers = #tpu.dot_dimension_numbers<[1], [0], [0], [1], [0, 0, 1, 1], [], []>} : vector<8x32xf32>, vector<32x128xf32>, vector<8x128xf32> -> vector<8x128xf32>
    %c0_8 = arith.constant 0 : index
    %c0_9 = arith.constant 0 : index
    %8 = vector.load %arg5[%c0_8, %c0_9] : memref<1x128xf32, #tpu.memory_space<vmem>>, vector<1x128xf32>
    %9 = vector.broadcast %8 : vector<1x128xf32> to vector<8x128xf32>
    %10 = arith.addf %7, %9 : vector<8x128xf32>
    %cst_10 = arith.constant 0.000000e+00 : f32
    %11 = vector.broadcast %cst_10 : f32 to vector<8x128xf32>
    %12 = arith.subf %11, %10 : vector<8x128xf32>
    %13 = math.exp %12 : vector<8x128xf32>
    %cst_11 = arith.constant 1.000000e+00 : f32
    %14 = vector.broadcast %cst_11 : f32 to vector<8x128xf32>
    %15 = arith.addf %14, %13 : vector<8x128xf32>
    %cst_12 = arith.constant 1.000000e+00 : f32
    %16 = vector.broadcast %cst_12 : f32 to vector<8x128xf32>
    %17 = arith.divf %16, %15 : vector<8x128xf32>
    %18 = arith.mulf %10, %17 : vector<8x128xf32>
    %c0_13 = arith.constant 0 : index
    %c0_14 = arith.constant 0 : index
    %19 = vector.load %arg6[%c0_13, %c0_14] : memref<128x32xf32, #tpu.memory_space<vmem>>, vector<128x32xf32>
    %cst_15 = arith.constant dense<0.000000e+00> : vector<8x32xf32>
    %20 = tpu.matmul %18, %19, %cst_15 {dimension_numbers = #tpu.dot_dimension_numbers<[1], [0], [0], [1], [0, 0, 1, 1], [], []>} : vector<8x128xf32>, vector<128x32xf32>, vector<8x32xf32> -> vector<8x32xf32>
    %c0_16 = arith.constant 0 : index
    %c0_17 = arith.constant 0 : index
    %21 = vector.load %arg7[%c0_16, %c0_17] : memref<1x32xf32, #tpu.memory_space<vmem>>, vector<1x32xf32>
    %22 = vector.broadcast %21 : vector<1x32xf32> to vector<8x32xf32>
    %23 = arith.addf %20, %22 : vector<8x32xf32>
    %cst_18 = arith.constant 0.000000e+00 : f32
    %24 = vector.broadcast %cst_18 : f32 to vector<8x32xf32>
    %25 = arith.subf %24, %23 : vector<8x32xf32>
    %26 = math.exp %25 : vector<8x32xf32>
    %cst_19 = arith.constant 1.000000e+00 : f32
    %27 = vector.broadcast %cst_19 : f32 to vector<8x32xf32>
    %28 = arith.addf %27, %26 : vector<8x32xf32>
    %cst_20 = arith.constant 1.000000e+00 : f32
    %29 = vector.broadcast %cst_20 : f32 to vector<8x32xf32>
    %30 = arith.divf %29, %28 : vector<8x32xf32>
    %31 = arith.mulf %23, %30 : vector<8x32xf32>
    %c0_21 = arith.constant 0 : index
    %c0_22 = arith.constant 0 : index
    %32 = vector.load %arg8[%c0_21, %c0_22] : memref<32x128xf32, #tpu.memory_space<vmem>>, vector<32x128xf32>
    %cst_23 = arith.constant dense<0.000000e+00> : vector<8x128xf32>
    %33 = tpu.matmul %31, %32, %cst_23 {dimension_numbers = #tpu.dot_dimension_numbers<[1], [0], [0], [1], [0, 0, 1, 1], [], []>} : vector<8x32xf32>, vector<32x128xf32>, vector<8x128xf32> -> vector<8x128xf32>
    %c0_24 = arith.constant 0 : index
    %c0_25 = arith.constant 0 : index
    %34 = vector.load %arg9[%c0_24, %c0_25] : memref<1x128xf32, #tpu.memory_space<vmem>>, vector<1x128xf32>
    %35 = vector.broadcast %34 : vector<1x128xf32> to vector<8x128xf32>
    %36 = arith.addf %33, %35 : vector<8x128xf32>
    %37 = tpu.iota {dimensions = array<i32: 1>} : vector<1x128xi32>
    %c3_i32 = arith.constant 3 : i32
    %38 = vector.broadcast %c3_i32 : i32 to vector<1x128xi32>
    %39 = arith.cmpi slt, %37, %38 : vector<1x128xi32>
    %c3_i32_26 = arith.constant 3 : i32
    %40 = vector.broadcast %c3_i32_26 : i32 to vector<1x128xi32>
    %41 = arith.cmpi eq, %37, %40 : vector<1x128xi32>
    %c11_i32 = arith.constant 11 : i32
    %42 = vector.broadcast %c11_i32 : i32 to vector<1x128xi32>
    %43 = arith.cmpi sge, %37, %42 : vector<1x128xi32>
    %c14_i32 = arith.constant 14 : i32
    %44 = vector.broadcast %c14_i32 : i32 to vector<1x128xi32>
    %45 = arith.cmpi slt, %37, %44 : vector<1x128xi32>
    %46 = arith.andi %43, %45 : vector<1x128xi1>
    %47 = arith.ori %41, %46 : vector<1x128xi1>
    %c4_i32 = arith.constant 4 : i32
    %48 = vector.broadcast %c4_i32 : i32 to vector<1x128xi32>
    %49 = arith.cmpi sge, %37, %48 : vector<1x128xi32>
    %c7_i32 = arith.constant 7 : i32
    %50 = vector.broadcast %c7_i32 : i32 to vector<1x128xi32>
    %51 = arith.cmpi slt, %37, %50 : vector<1x128xi32>
    %52 = arith.andi %49, %51 : vector<1x128xi1>
    %c7_i32_27 = arith.constant 7 : i32
    %53 = vector.broadcast %c7_i32_27 : i32 to vector<1x128xi32>
    %54 = arith.cmpi sge, %37, %53 : vector<1x128xi32>
    %c11_i32_28 = arith.constant 11 : i32
    %55 = vector.broadcast %c11_i32_28 : i32 to vector<1x128xi32>
    %56 = arith.cmpi slt, %37, %55 : vector<1x128xi32>
    %57 = arith.andi %54, %56 : vector<1x128xi1>
    %c32_i32 = arith.constant 32 : i32
    %58 = vector.broadcast %c32_i32 : i32 to vector<1x128xi32>
    %59 = arith.cmpi sge, %37, %58 : vector<1x128xi32>
    %c64_i32 = arith.constant 64 : i32
    %60 = vector.broadcast %c64_i32 : i32 to vector<1x128xi32>
    %61 = arith.cmpi slt, %37, %60 : vector<1x128xi32>
    %62 = arith.andi %59, %61 : vector<1x128xi1>
    %c64_i32_29 = arith.constant 64 : i32
    %63 = vector.broadcast %c64_i32_29 : i32 to vector<1x128xi32>
    %64 = arith.cmpi sge, %37, %63 : vector<1x128xi32>
    %c85_i32 = arith.constant 85 : i32
    %65 = vector.broadcast %c85_i32 : i32 to vector<1x128xi32>
    %66 = arith.cmpi slt, %37, %65 : vector<1x128xi32>
    %67 = arith.andi %64, %66 : vector<1x128xi1>
    %c85_i32_30 = arith.constant 85 : i32
    %68 = vector.broadcast %c85_i32_30 : i32 to vector<1x128xi32>
    %69 = arith.cmpi sge, %37, %68 : vector<1x128xi32>
    %c106_i32 = arith.constant 106 : i32
    %70 = vector.broadcast %c106_i32 : i32 to vector<1x128xi32>
    %71 = arith.cmpi slt, %37, %70 : vector<1x128xi32>
    %72 = arith.andi %69, %71 : vector<1x128xi1>
    %c106_i32_31 = arith.constant 106 : i32
    %73 = vector.broadcast %c106_i32_31 : i32 to vector<1x128xi32>
    %74 = arith.cmpi sge, %37, %73 : vector<1x128xi32>
    %c127_i32 = arith.constant 127 : i32
    %75 = vector.broadcast %c127_i32 : i32 to vector<1x128xi32>
    %76 = arith.cmpi slt, %37, %75 : vector<1x128xi32>
    %77 = arith.andi %74, %76 : vector<1x128xi1>
    %78 = arith.ori %62, %67 : vector<1x128xi1>
    %79 = arith.ori %78, %72 : vector<1x128xi1>
    %80 = arith.ori %79, %77 : vector<1x128xi1>
    %cst_32 = arith.constant -1.000000e+30 : f32
    %81 = vector.shape_cast %67 : vector<1x128xi1> to vector<1x128xi1>
    %82 = vector.broadcast %81 : vector<1x128xi1> to vector<8x128xi1>
    %83 = vector.broadcast %cst_32 : f32 to vector<8x128xf32>
    %84 = arith.select %82, %36, %83 : vector<8x128xi1>, vector<8x128xf32>
    %cst_33 = arith.constant dense<0xFF800000> : vector<8xf32>
    %85 = vector.multi_reduction <maximumf>, %84, %cst_33 [1] : vector<8x128xf32> to vector<8xf32>
    %86 = vector.shape_cast %85 : vector<8xf32> to vector<8x1xf32>
    %cst_34 = arith.constant -1.000000e+30 : f32
    %87 = vector.shape_cast %72 : vector<1x128xi1> to vector<1x128xi1>
    %88 = vector.broadcast %87 : vector<1x128xi1> to vector<8x128xi1>
    %89 = vector.broadcast %cst_34 : f32 to vector<8x128xf32>
    %90 = arith.select %88, %36, %89 : vector<8x128xi1>, vector<8x128xf32>
    %cst_35 = arith.constant dense<0xFF800000> : vector<8xf32>
    %91 = vector.multi_reduction <maximumf>, %90, %cst_35 [1] : vector<8x128xf32> to vector<8xf32>
    %92 = vector.shape_cast %91 : vector<8xf32> to vector<8x1xf32>
    %cst_36 = arith.constant -1.000000e+30 : f32
    %93 = vector.shape_cast %77 : vector<1x128xi1> to vector<1x128xi1>
    %94 = vector.broadcast %93 : vector<1x128xi1> to vector<8x128xi1>
    %95 = vector.broadcast %cst_36 : f32 to vector<8x128xf32>
    %96 = arith.select %94, %36, %95 : vector<8x128xi1>, vector<8x128xf32>
    %cst_37 = arith.constant dense<0xFF800000> : vector<8xf32>
    %97 = vector.multi_reduction <maximumf>, %96, %cst_37 [1] : vector<8x128xf32> to vector<8xf32>
    %98 = vector.shape_cast %97 : vector<8xf32> to vector<8x1xf32>
    %cst_38 = arith.constant -1.000000e+30 : f32
    %99 = vector.shape_cast %62 : vector<1x128xi1> to vector<1x128xi1>
    %100 = vector.broadcast %99 : vector<1x128xi1> to vector<8x128xi1>
    %101 = vector.broadcast %cst_38 : f32 to vector<8x128xf32>
    %102 = arith.select %100, %36, %101 : vector<8x128xi1>, vector<8x128xf32>
    %cst_39 = arith.constant dense<0xFF800000> : vector<8xf32>
    %103 = vector.multi_reduction <maximumf>, %102, %cst_39 [1] : vector<8x128xf32> to vector<8xf32>
    %104 = vector.shape_cast %103 : vector<8xf32> to vector<8x1xf32>
    %cst_40 = arith.constant 0.000000e+00 : f32
    %105 = vector.shape_cast %62 : vector<1x128xi1> to vector<1x128xi1>
    %106 = vector.broadcast %105 : vector<1x128xi1> to vector<8x128xi1>
    %107 = vector.shape_cast %104 : vector<8x1xf32> to vector<8x1xf32>
    %108 = vector.broadcast %107 : vector<8x1xf32> to vector<8x128xf32>
    %109 = vector.broadcast %cst_40 : f32 to vector<8x128xf32>
    %110 = arith.select %106, %108, %109 : vector<8x128xi1>, vector<8x128xf32>
    %111 = vector.shape_cast %77 : vector<1x128xi1> to vector<1x128xi1>
    %112 = vector.broadcast %111 : vector<1x128xi1> to vector<8x128xi1>
    %113 = vector.shape_cast %98 : vector<8x1xf32> to vector<8x1xf32>
    %114 = vector.broadcast %113 : vector<8x1xf32> to vector<8x128xf32>
    %115 = arith.select %112, %114, %110 : vector<8x128xi1>, vector<8x128xf32>
    %116 = vector.shape_cast %72 : vector<1x128xi1> to vector<1x128xi1>
    %117 = vector.broadcast %116 : vector<1x128xi1> to vector<8x128xi1>
    %118 = vector.shape_cast %92 : vector<8x1xf32> to vector<8x1xf32>
    %119 = vector.broadcast %118 : vector<8x1xf32> to vector<8x128xf32>
    %120 = arith.select %117, %119, %115 : vector<8x128xi1>, vector<8x128xf32>
    %121 = vector.shape_cast %67 : vector<1x128xi1> to vector<1x128xi1>
    %122 = vector.broadcast %121 : vector<1x128xi1> to vector<8x128xi1>
    %123 = vector.shape_cast %86 : vector<8x1xf32> to vector<8x1xf32>
    %124 = vector.broadcast %123 : vector<8x1xf32> to vector<8x128xf32>
    %125 = arith.select %122, %124, %120 : vector<8x128xi1>, vector<8x128xf32>
    %126 = arith.subf %36, %125 : vector<8x128xf32>
    %cst_41 = arith.constant -1.000000e+30 : f32
    %127 = vector.shape_cast %80 : vector<1x128xi1> to vector<1x128xi1>
    %128 = vector.broadcast %127 : vector<1x128xi1> to vector<8x128xi1>
    %129 = vector.broadcast %cst_41 : f32 to vector<8x128xf32>
    %130 = arith.select %128, %126, %129 : vector<8x128xi1>, vector<8x128xf32>
    %131 = math.exp %130 : vector<8x128xf32>
    %c0_42 = arith.constant 0 : index
    %c0_43 = arith.constant 0 : index
    %132 = vector.load %arg10[%c0_42, %c0_43] : memref<128x128xf32, #tpu.memory_space<vmem>>, vector<128x128xf32>
    %cst_44 = arith.constant dense<0.000000e+00> : vector<8x128xf32>
    %133 = tpu.matmul %131, %132, %cst_44 {dimension_numbers = #tpu.dot_dimension_numbers<[1], [0], [0], [1], [0, 0, 1, 1], [], []>} : vector<8x128xf32>, vector<128x128xf32>, vector<8x128xf32> -> vector<8x128xf32>
    %c0_i32 = arith.constant 0 : i32
    %134 = vector.broadcast %c0_i32 : i32 to vector<1x128xi32>
    %135 = arith.cmpi eq, %37, %134 : vector<1x128xi32>
    %cst_45 = arith.constant 0.000000e+00 : f32
    %136 = vector.shape_cast %67 : vector<1x128xi1> to vector<1x128xi1>
    %137 = vector.broadcast %136 : vector<1x128xi1> to vector<8x128xi1>
    %138 = vector.broadcast %cst_45 : f32 to vector<8x128xf32>
    %139 = arith.select %137, %131, %138 : vector<8x128xi1>, vector<8x128xf32>
    %cst_46 = arith.constant dense<0.000000e+00> : vector<8xf32>
    %140 = vector.multi_reduction <add>, %139, %cst_46 [1] : vector<8x128xf32> to vector<8xf32>
    %141 = vector.shape_cast %140 : vector<8xf32> to vector<8x1xf32>
    %c1_i32 = arith.constant 1 : i32
    %142 = vector.broadcast %c1_i32 : i32 to vector<1x128xi32>
    %143 = arith.cmpi eq, %37, %142 : vector<1x128xi32>
    %cst_47 = arith.constant 0.000000e+00 : f32
    %144 = vector.shape_cast %72 : vector<1x128xi1> to vector<1x128xi1>
    %145 = vector.broadcast %144 : vector<1x128xi1> to vector<8x128xi1>
    %146 = vector.broadcast %cst_47 : f32 to vector<8x128xf32>
    %147 = arith.select %145, %131, %146 : vector<8x128xi1>, vector<8x128xf32>
    %cst_48 = arith.constant dense<0.000000e+00> : vector<8xf32>
    %148 = vector.multi_reduction <add>, %147, %cst_48 [1] : vector<8x128xf32> to vector<8xf32>
    %149 = vector.shape_cast %148 : vector<8xf32> to vector<8x1xf32>
    %c2_i32 = arith.constant 2 : i32
    %150 = vector.broadcast %c2_i32 : i32 to vector<1x128xi32>
    %151 = arith.cmpi eq, %37, %150 : vector<1x128xi32>
    %cst_49 = arith.constant 0.000000e+00 : f32
    %152 = vector.shape_cast %77 : vector<1x128xi1> to vector<1x128xi1>
    %153 = vector.broadcast %152 : vector<1x128xi1> to vector<8x128xi1>
    %154 = vector.broadcast %cst_49 : f32 to vector<8x128xf32>
    %155 = arith.select %153, %131, %154 : vector<8x128xi1>, vector<8x128xf32>
    %cst_50 = arith.constant dense<0.000000e+00> : vector<8xf32>
    %156 = vector.multi_reduction <add>, %155, %cst_50 [1] : vector<8x128xf32> to vector<8xf32>
    %157 = vector.shape_cast %156 : vector<8xf32> to vector<8x1xf32>
    %cst_51 = arith.constant 1.000000e+00 : f32
    %158 = vector.shape_cast %151 : vector<1x128xi1> to vector<1x128xi1>
    %159 = vector.broadcast %158 : vector<1x128xi1> to vector<8x128xi1>
    %160 = vector.shape_cast %157 : vector<8x1xf32> to vector<8x1xf32>
    %161 = vector.broadcast %160 : vector<8x1xf32> to vector<8x128xf32>
    %162 = vector.broadcast %cst_51 : f32 to vector<8x128xf32>
    %163 = arith.select %159, %161, %162 : vector<8x128xi1>, vector<8x128xf32>
    %164 = vector.shape_cast %143 : vector<1x128xi1> to vector<1x128xi1>
    %165 = vector.broadcast %164 : vector<1x128xi1> to vector<8x128xi1>
    %166 = vector.shape_cast %149 : vector<8x1xf32> to vector<8x1xf32>
    %167 = vector.broadcast %166 : vector<8x1xf32> to vector<8x128xf32>
    %168 = arith.select %165, %167, %163 : vector<8x128xi1>, vector<8x128xf32>
    %169 = vector.shape_cast %135 : vector<1x128xi1> to vector<1x128xi1>
    %170 = vector.broadcast %169 : vector<1x128xi1> to vector<8x128xi1>
    %171 = vector.shape_cast %141 : vector<8x1xf32> to vector<8x1xf32>
    %172 = vector.broadcast %171 : vector<8x1xf32> to vector<8x128xf32>
    %173 = arith.select %170, %172, %168 : vector<8x128xi1>, vector<8x128xf32>
    %174 = tpu.reciprocal %173 {approx = true} : vector<8x128xf32> -> vector<8x128xf32>
    %175 = arith.mulf %133, %174 : vector<8x128xf32>
    %176 = arith.mulf %133, %133 : vector<8x128xf32>
    %cst_52 = arith.constant 0.000000e+00 : f32
    %177 = vector.shape_cast %57 : vector<1x128xi1> to vector<1x128xi1>
    %178 = vector.broadcast %177 : vector<1x128xi1> to vector<8x128xi1>
    %179 = vector.broadcast %cst_52 : f32 to vector<8x128xf32>
    %180 = arith.select %178, %176, %179 : vector<8x128xi1>, vector<8x128xf32>
    %cst_53 = arith.constant dense<0.000000e+00> : vector<8xf32>
    %181 = vector.multi_reduction <add>, %180, %cst_53 [1] : vector<8x128xf32> to vector<8xf32>
    %182 = vector.shape_cast %181 : vector<8xf32> to vector<8x1xf32>
    %cst_54 = arith.constant 1.000000e-24 : f32
    %183 = vector.broadcast %cst_54 : f32 to vector<8x1xf32>
    %184 = arith.maximumf %182, %183 : vector<8x1xf32>
    %185 = math.rsqrt %184 : vector<8x1xf32>
    %186 = vector.broadcast %185 : vector<8x1xf32> to vector<8x128xf32>
    %187 = arith.mulf %133, %186 : vector<8x128xf32>
    %cst_55 = arith.constant 0.000000e+00 : f32
    %188 = vector.broadcast %cst_55 : f32 to vector<8x128xf32>
    %189 = arith.subf %188, %36 : vector<8x128xf32>
    %190 = math.exp %189 : vector<8x128xf32>
    %cst_56 = arith.constant 1.000000e+00 : f32
    %191 = vector.broadcast %cst_56 : f32 to vector<8x128xf32>
    %192 = arith.addf %191, %190 : vector<8x128xf32>
    %193 = tpu.reciprocal %192 {approx = true} : vector<8x128xf32> -> vector<8x128xf32>
    %cst_57 = arith.constant 0.000000e+00 : f32
    %194 = vector.broadcast %cst_57 : f32 to vector<8x128xf32>
    %195 = arith.maximumf %36, %194 : vector<8x128xf32>
    %196 = math.absf %36 : vector<8x128xf32>
    %cst_58 = arith.constant 0.000000e+00 : f32
    %197 = vector.broadcast %cst_58 : f32 to vector<8x128xf32>
    %198 = arith.subf %197, %196 : vector<8x128xf32>
    %199 = math.exp %198 : vector<8x128xf32>
    %cst_59 = arith.constant 1.000000e+00 : f32
    %200 = vector.broadcast %cst_59 : f32 to vector<8x128xf32>
    %201 = arith.addf %200, %199 : vector<8x128xf32>
    %202 = math.log %201 : vector<8x128xf32>
    %203 = arith.addf %195, %202 : vector<8x128xf32>
    %cst_60 = arith.constant 1.000000e-01 : f32
    %204 = vector.broadcast %cst_60 : f32 to vector<8x128xf32>
    %205 = arith.mulf %204, %203 : vector<8x128xf32>
    %cst_61 = arith.constant 0.000000e+00 : f32
    %206 = vector.shape_cast %52 : vector<1x128xi1> to vector<1x128xi1>
    %207 = vector.broadcast %206 : vector<1x128xi1> to vector<8x128xi1>
    %208 = vector.broadcast %cst_61 : f32 to vector<8x128xf32>
    %209 = arith.select %207, %205, %208 : vector<8x128xi1>, vector<8x128xf32>
    %210 = vector.shape_cast %47 : vector<1x128xi1> to vector<1x128xi1>
    %211 = vector.broadcast %210 : vector<1x128xi1> to vector<8x128xi1>
    %212 = arith.select %211, %193, %209 : vector<8x128xi1>, vector<8x128xf32>
    %213 = vector.shape_cast %57 : vector<1x128xi1> to vector<1x128xi1>
    %214 = vector.broadcast %213 : vector<1x128xi1> to vector<8x128xi1>
    %215 = arith.select %214, %187, %212 : vector<8x128xi1>, vector<8x128xf32>
    %216 = vector.shape_cast %39 : vector<1x128xi1> to vector<1x128xi1>
    %217 = vector.broadcast %216 : vector<1x128xi1> to vector<8x128xi1>
    %218 = arith.select %217, %175, %215 : vector<8x128xi1>, vector<8x128xf32>
    %c0_62 = arith.constant 0 : index
    %c0_63 = arith.constant 0 : index
    %219 = vector.load %arg11[%c0_62, %c0_63] : memref<8x128xf32, #tpu.memory_space<vmem>>, vector<8x128xf32>
    tpu.vector_store %arg11[%c0_62, %c0_63], %218 {strides = array<i32>} : memref<8x128xf32, #tpu.memory_space<vmem>>, vector<8x128xf32>,
    return
  }
  func.func @transform_0(%arg0: i32) -> (i32, i32) {
    %c0_i32 = arith.constant 0 : i32
    %c0_i32_0 = arith.constant 0 : i32
    return %arg0, %c0_i32 : i32, i32
  }
  func.func @transform_1(%arg0: i32) -> (i32, i32) {
    %c0_i32 = arith.constant 0 : i32
    %c0_i32_0 = arith.constant 0 : i32
    %c0_i32_1 = arith.constant 0 : i32
    return %c0_i32, %c0_i32_0 : i32, i32
  }
  func.func @transform_2(%arg0: i32) -> (i32, i32) {
    %c0_i32 = arith.constant 0 : i32
    %c0_i32_0 = arith.constant 0 : i32
    %c0_i32_1 = arith.constant 0 : i32
    return %c0_i32, %c0_i32_0 : i32, i32
  }
  func.func @transform_3(%arg0: i32) -> (i32, i32) {
    %c0_i32 = arith.constant 0 : i32
    %c0_i32_0 = arith.constant 0 : i32
    %c0_i32_1 = arith.constant 0 : i32
    return %c0_i32, %c0_i32_0 : i32, i32
  }
  func.func @transform_4(%arg0: i32) -> (i32, i32) {
    %c0_i32 = arith.constant 0 : i32
    %c0_i32_0 = arith.constant 0 : i32
    %c0_i32_1 = arith.constant 0 : i32
    return %c0_i32, %c0_i32_0 : i32, i32
  }
  func.func @transform_5(%arg0: i32) -> (i32, i32) {
    %c0_i32 = arith.constant 0 : i32
    %c0_i32_0 = arith.constant 0 : i32
    %c0_i32_1 = arith.constant 0 : i32
    return %c0_i32, %c0_i32_0 : i32, i32
  }
  func.func @transform_6(%arg0: i32) -> (i32, i32) {
    %c0_i32 = arith.constant 0 : i32
    %c0_i32_0 = arith.constant 0 : i32
    %c0_i32_1 = arith.constant 0 : i32
    return %c0_i32, %c0_i32_0 : i32, i32
  }
  func.func @transform_7(%arg0: i32) -> (i32, i32) {
    %c0_i32 = arith.constant 0 : i32
    %c0_i32_0 = arith.constant 0 : i32
    %c0_i32_1 = arith.constant 0 : i32
    return %c0_i32, %c0_i32_0 : i32, i32
  }
  func.func @transform_8(%arg0: i32) -> (i32, i32) {
    %c0_i32 = arith.constant 0 : i32
    %c0_i32_0 = arith.constant 0 : i32
    %c0_i32_1 = arith.constant 0 : i32
    return %c0_i32, %c0_i32_0 : i32, i32
  }
  func.func @transform_9(%arg0: i32) -> (i32, i32) {
    %c0_i32 = arith.constant 0 : i32
    %c0_i32_0 = arith.constant 0 : i32
    %c0_i32_1 = arith.constant 0 : i32
    return %c0_i32, %c0_i32_0 : i32, i32
  }
  func.func @transform_10(%arg0: i32) -> (i32, i32) {
    %c0_i32 = arith.constant 0 : i32
    %c0_i32_0 = arith.constant 0 : i32
    return %arg0, %c0_i32 : i32, i32
  }
}

</mosaic_0001>

<llo_original>
// kernel: _lambda_.1
$region0: #{_lambda_.1}
  #allocation0 [shape = 'u32[]', space=smem, size = 0x4, offset = 0x4, fixed_abs, tag = 'smem constant byte address 0x4 - core index']
  #allocation1 [shape = 'u32[144,128]{1,0:T(1,128)}', space=vmem, size = 0x12000, scoped, tag = 'internal scratch']
  %s0 = inlined_call_operand.vmem [shape: f32[16,192], index: 0, kind: input, shape index: {}]
  %s1 = inlined_call_operand.vmem [shape: f32[192,32], index: 1, kind: input, shape index: {}]
  %s2 = inlined_call_operand.vmem [shape: f32[1,32], index: 2, kind: input, shape index: {}, may-alias: {2,6}]
  %s3 = inlined_call_operand.vmem [shape: f32[32,128], index: 3, kind: input, shape index: {}]
  %s4 = inlined_call_operand.vmem [shape: f32[1,128], index: 4, kind: input, shape index: {}]
  %s5 = inlined_call_operand.vmem [shape: f32[128,32], index: 5, kind: input, shape index: {}]
  %s6 = inlined_call_operand.vmem [shape: f32[1,32], index: 6, kind: input, shape index: {}, may-alias: {2,6}]
  %s7 = inlined_call_operand.vmem [shape: f32[32,128], index: 7, kind: input, shape index: {}]
  %s8 = inlined_call_operand.vmem [shape: f32[1,128], index: 8, kind: input, shape index: {}]
  %s9 = inlined_call_operand.vmem [shape: f32[128,128], index: 9, kind: input, shape index: {}]
  %s10 = inlined_call_operand.vmem [shape: f32[16,128], index: 10, kind: output, shape index: {}]
  %s11 = sld [smem:[#allocation0]]
  $region73: #{_lambda_.1} parent=0
    _
  %s13 = ssub.s32 1, %s11
  %s14 = scalar_select 0, %s13, %s11
  loop: start=0, step=1, limit=4
  $region2: #{_lambda_.1} parent=0 // loop_pre_header
    _
  $region3: #{_lambda_.1} parent=0 // loop_header
    %s16 = sphi 0, %s20
    %p17 = scmp.ge.s32.totalorder %s16, 4
    %s26 = sphi 0, %s28
    %s29 = sphi 0, %s26
    %s30 = sphi 0, %s29
    %s46 = sphi 0, %s30
    %s50 = sphi 0, %s50
    %s52 = sphi 0, %s50
    %s53 = sphi 0, %s52
    %s67 = sphi 0, %s53
    %s71 = sphi 0, %s71
    %s73 = sphi 0, %s71
    %s74 = sphi 0, %s73
    %s88 = sphi 0, %s74
    %s92 = sphi 0, %s92
    %s94 = sphi 0, %s92
    %s95 = sphi 0, %s94
    %s109 = sphi 0, %s95
    %s113 = sphi 0, %s113
    %s115 = sphi 0, %s113
    %s116 = sphi 0, %s115
    %s130 = sphi 0, %s116
    %s134 = sphi 0, %s134
    %s136 = sphi 0, %s134
    %s137 = sphi 0, %s136
    %s151 = sphi 0, %s137
    %s155 = sphi 0, %s155
    %s157 = sphi 0, %s155
    %s158 = sphi 0, %s157
    %s172 = sphi 0, %s158
    %s176 = sphi 0, %s176
    %s178 = sphi 0, %s176
    %s179 = sphi 0, %s178
    %s193 = sphi 0, %s179
    %s197 = sphi 0, %s197
    %s199 = sphi 0, %s197
    %s200 = sphi 0, %s199
    %s214 = sphi 0, %s200
    %s218 = sphi 0, %s218
    %s220 = sphi 0, %s218
    %s221 = sphi 0, %s220
    %s235 = sphi 0, %s221
    %s241 = sphi 0, %s243
    %s244 = sphi 0, %s241
    %s245 = sphi 0, %s244
    %s261 = sphi 0, %s245
  $region4: #{_lambda_.1} parent=0 // loop_header_branch
    %19 = sbr.rel (%p17) target = $region8
  $region5: #{_lambda_.1} parent=0 // loop_body
    %s21 = ssub.s32 %s16, 1
    %s22 = ssub.s32 %s16, 2
    %s23 = sadd.s32 %s16, 1
    %s24 = ssub.s32 %s16, %s23
    %p25 = scmp.eq.s32.totalorder %s24, 0
    %s27 = sadd.s32 %s26, 1
    %s28 = scalar_select %p25, %s26, %s27
    %p31 = pneg %p25
    %p32 = scmp.eq.s32.totalorder %s16, 1
    %p33 = por %p31, %p32
    %p34 = scmp.ne.s32.totalorder %s26, %s29
    %p35 = scmp.eq.s32.totalorder %s16, 0
    %p36 = por %p34, %p35
    %p37 = scmp.ne.s32.totalorder %s26, %s29
    %p38 = scmp.eq.s32.totalorder %s21, 1
    %p39 = por %p37, %p38
    %p40 = scmp.ne.s32.totalorder %s29, %s30
    %p41 = scmp.eq.s32.totalorder %s21, 0
    %p42 = por %p40, %p41
    %p43 = scmp.ne.s32.totalorder %s29, %s30
    %p44 = scmp.eq.s32.totalorder %s22, 1
    %p45 = por %p43, %p44
    %p47 = scmp.ne.s32.totalorder %s30, %s46
    %p48 = scmp.eq.s32.totalorder %s22, 0
    %p49 = por %p47, %p48
    %s51 = sadd.s32 %s50, 1
    %p54 = scmp.eq.s32.totalorder %s16, 1
    %p55 = scmp.ne.s32.totalorder %s50, %s52
    %p56 = scmp.eq.s32.totalorder %s16, 0
    %p57 = por %p55, %p56
    %p58 = scmp.ne.s32.totalorder %s50, %s52
    %p59 = scmp.eq.s32.totalorder %s21, 1
    %p60 = por %p58, %p59
    %p61 = scmp.ne.s32.totalorder %s52, %s53
    %p62 = scmp.eq.s32.totalorder %s21, 0
    %p63 = por %p61, %p62
    %p64 = scmp.ne.s32.totalorder %s52, %s53
    %p65 = scmp.eq.s32.totalorder %s22, 1
    %p66 = por %p64, %p65
    %p68 = scmp.ne.s32.totalorder %s53, %s67
    %p69 = scmp.eq.s32.totalorder %s22, 0
    %p70 = por %p68, %p69
    %s72 = sadd.s32 %s71, 1
    %p75 = scmp.eq.s32.totalorder %s16, 1
    %p76 = scmp.ne.s32.totalorder %s71, %s73
    %p77 = scmp.eq.s32.totalorder %s16, 0
    %p78 = por %p76, %p77
    %p79 = scmp.ne.s32.totalorder %s71, %s73
    %p80 = scmp.eq.s32.totalorder %s21, 1
    %p81 = por %p79, %p80
    %p82 = scmp.ne.s32.totalorder %s73, %s74
    %p83 = scmp.eq.s32.totalorder %s21, 0
    %p84 = por %p82, %p83
    %p85 = scmp.ne.s32.totalorder %s73, %s74
    %p86 = scmp.eq.s32.totalorder %s22, 1
    %p87 = por %p85, %p86
    %p89 = scmp.ne.s32.totalorder %s74, %s88
    %p90 = scmp.eq.s32.totalorder %s22, 0
    %p91 = por %p89, %p90
    %s93 = sadd.s32 %s92, 1
    %p96 = scmp.eq.s32.totalorder %s16, 1
    %p97 = scmp.ne.s32.totalorder %s92, %s94
    %p98 = scmp.eq.s32.totalorder %s16, 0
    %p99 = por %p97, %p98
    %p100 = scmp.ne.s32.totalorder %s92, %s94
    %p101 = scmp.eq.s32.totalorder %s21, 1
    %p102 = por %p100, %p101
    %p103 = scmp.ne.s32.totalorder %s94, %s95
    %p104 = scmp.eq.s32.totalorder %s21, 0
    %p105 = por %p103, %p104
    %p106 = scmp.ne.s32.totalorder %s94, %s95
    %p107 = scmp.eq.s32.totalorder %s22, 1
    %p108 = por %p106, %p107
    %p110 = scmp.ne.s32.totalorder %s95, %s109
    %p111 = scmp.eq.s32.totalorder %s22, 0
    %p112 = por %p110, %p111
    %s114 = sadd.s32 %s113, 1
    %p117 = scmp.eq.s32.totalorder %s16, 1
    %p118 = scmp.ne.s32.totalorder %s113, %s115
    %p119 = scmp.eq.s32.totalorder %s16, 0
    %p120 = por %p118, %p119
    %p121 = scmp.ne.s32.totalorder %s113, %s115
    %p122 = scmp.eq.s32.totalorder %s21, 1
    %p123 = por %p121, %p122
    %p124 = scmp.ne.s32.totalorder %s115, %s116
    %p125 = scmp.eq.s32.totalorder %s21, 0
    %p126 = por %p124, %p125
    %p127 = scmp.ne.s32.totalorder %s115, %s116
    %p128 = scmp.eq.s32.totalorder %s22, 1
    %p129 = por %p127, %p128
    %p131 = scmp.ne.s32.totalorder %s116, %s130
    %p132 = scmp.eq.s32.totalorder %s22, 0
    %p133 = por %p131, %p132
    %s135 = sadd.s32 %s134, 1
    %p138 = scmp.eq.s32.totalorder %s16, 1
    %p139 = scmp.ne.s32.totalorder %s134, %s136
    %p140 = scmp.eq.s32.totalorder %s16, 0
    %p141 = por %p139, %p140
    %p142 = scmp.ne.s32.totalorder %s134, %s136
    %p143 = scmp.eq.s32.totalorder %s21, 1
    %p144 = por %p142, %p143
    %p145 = scmp.ne.s32.totalorder %s136, %s137
    %p146 = scmp.eq.s32.totalorder %s21, 0
    %p147 = por %p145, %p146
    %p148 = scmp.ne.s32.totalorder %s136, %s137
    %p149 = scmp.eq.s32.totalorder %s22, 1
    %p150 = por %p148, %p149
    %p152 = scmp.ne.s32.totalorder %s137, %s151
    %p153 = scmp.eq.s32.totalorder %s22, 0
    %p154 = por %p152, %p153
    %s156 = sadd.s32 %s155, 1
    %p159 = scmp.eq.s32.totalorder %s16, 1
    %p160 = scmp.ne.s32.totalorder %s155, %s157
    %p161 = scmp.eq.s32.totalorder %s16, 0
    %p162 = por %p160, %p161
    %p163 = scmp.ne.s32.totalorder %s155, %s157
    %p164 = scmp.eq.s32.totalorder %s21, 1
    %p165 = por %p163, %p164
    %p166 = scmp.ne.s32.totalorder %s157, %s158
    %p167 = scmp.eq.s32.totalorder %s21, 0
    %p168 = por %p166, %p167
    %p169 = scmp.ne.s32.totalorder %s157, %s158
    %p170 = scmp.eq.s32.totalorder %s22, 1
    %p171 = por %p169, %p170
    %p173 = scmp.ne.s32.totalorder %s158, %s172
    %p174 = scmp.eq.s32.totalorder %s22, 0
    %p175 = por %p173, %p174
    %s177 = sadd.s32 %s176, 1
    %p180 = scmp.eq.s32.totalorder %s16, 1
    %p181 = scmp.ne.s32.totalorder %s176, %s178
    %p182 = scmp.eq.s32.totalorder %s16, 0
    %p183 = por %p181, %p182
    %p184 = scmp.ne.s32.totalorder %s176, %s178
    %p185 = scmp.eq.s32.totalorder %s21, 1
    %p186 = por %p184, %p185
    %p187 = scmp.ne.s32.totalorder %s178, %s179
    %p188 = scmp.eq.s32.totalorder %s21, 0
    %p189 = por %p187, %p188
    %p190 = scmp.ne.s32.totalorder %s178, %s179
    %p191 = scmp.eq.s32.totalorder %s22, 1
    %p192 = por %p190, %p191
    %p194 = scmp.ne.s32.totalorder %s179, %s193
    %p195 = scmp.eq.s32.totalorder %s22, 0
    %p196 = por %p194, %p195
    %s198 = sadd.s32 %s197, 1
    %p201 = scmp.eq.s32.totalorder %s16, 1
    %p202 = scmp.ne.s32.totalorder %s197, %s199
    %p203 = scmp.eq.s32.totalorder %s16, 0
    %p204 = por %p202, %p203
    %p205 = scmp.ne.s32.totalorder %s197, %s199
    %p206 = scmp.eq.s32.totalorder %s21, 1
    %p207 = por %p205, %p206
    %p208 = scmp.ne.s32.totalorder %s199, %s200
    %p209 = scmp.eq.s32.totalorder %s21, 0
    %p210 = por %p208, %p209
    %p211 = scmp.ne.s32.totalorder %s199, %s200
    %p212 = scmp.eq.s32.totalorder %s22, 1
    %p213 = por %p211, %p212
    %p215 = scmp.ne.s32.totalorder %s200, %s214
    %p216 = scmp.eq.s32.totalorder %s22, 0
    %p217 = por %p215, %p216
    %s219 = sadd.s32 %s218, 1
    %p222 = scmp.eq.s32.totalorder %s16, 1
    %p223 = scmp.ne.s32.totalorder %s218, %s220
    %p224 = scmp.eq.s32.totalorder %s16, 0
    %p225 = por %p223, %p224
    %p226 = scmp.ne.s32.totalorder %s218, %s220
    %p227 = scmp.eq.s32.totalorder %s21, 1
    %p228 = por %p226, %p227
    %p229 = scmp.ne.s32.totalorder %s220, %s221
    %p230 = scmp.eq.s32.totalorder %s21, 0
    %p231 = por %p229, %p230
    %p232 = scmp.ne.s32.totalorder %s220, %s221
    %p233 = scmp.eq.s32.totalorder %s22, 1
    %p234 = por %p232, %p233
    %p236 = scmp.ne.s32.totalorder %s221, %s235
    %p237 = scmp.eq.s32.totalorder %s22, 0
    %p238 = por %p236, %p237
    %s239 = ssub.s32 %s16, %s23
    %p240 = scmp.eq.s32.totalorder %s239, 0
    %s242 = sadd.s32 %s241, 1
    %s243 = scalar_select %p240, %s241, %s242
    %p246 = pneg %p240
    %p247 = scmp.eq.s32.totalorder %s16, 1
    %p248 = por %p246, %p247
    %p249 = scmp.ne.s32.totalorder %s241, %s244
    %p250 = scmp.eq.s32.totalorder %s16, 0
    %p251 = por %p249, %p250
    %p252 = scmp.ne.s32.totalorder %s241, %s244
    %p253 = scmp.eq.s32.totalorder %s21, 1
    %p254 = por %p252, %p253
    %p255 = scmp.ne.s32.totalorder %s244, %s245
    %p256 = scmp.eq.s32.totalorder %s21, 0
    %p257 = por %p255, %p256
    %p258 = scmp.ne.s32.totalorder %s244, %s245
    %p259 = scmp.eq.s32.totalorder %s22, 1
    %p260 = por %p258, %p259
    %p262 = scmp.ne.s32.totalorder %s245, %s261
    %p263 = scmp.eq.s32.totalorder %s22, 0
    %p264 = por %p262, %p263
    %p265 = scmp.le.s32.totalorder 1, %s16
    %p266 = scmp.lt.s32.totalorder %s16, 3
    %p267 = pnand %p265, %p266
    %p268 = pneg %p267
    // Predicated region
    $region9: #{_lambda_.1} parent=5 // pred_check
      _
    $region10: #{_lambda_.1} parent=5 // pred_check_branch
      %270 = sbr.rel (%p267) target = $region12
    $region11: #{_lambda_.1} parent=5 // pred_region
      %s271 = ssub.s32 %s16, 1
      // Predicated region
      $region13: #{_lambda_.1} parent=11 // pred_check
        %p272 = pneg %p63
      $region14: #{_lambda_.1} parent=11 // pred_check_branch
        %274 = sbr.rel (%p272) target = $region16
      $region15: #{_lambda_.1} parent=11 // pred_region
        _
      $region16: #{_lambda_.1} parent=11 // pred_fallthru
        _
      // Predicated region
      $region17: #{_lambda_.1} parent=11 // pred_check
        %p275 = pneg %p84
      $region18: #{_lambda_.1} parent=11 // pred_check_branch
        %277 = sbr.rel (%p275) target = $region20
      $region19: #{_lambda_.1} parent=11 // pred_region
        _
      $region20: #{_lambda_.1} parent=11 // pred_fallthru
        _
      // Predicated region
      $region21: #{_lambda_.1} parent=11 // pred_check
        %p278 = pneg %p105
      $region22: #{_lambda_.1} parent=11 // pred_check_branch
        %280 = sbr.rel (%p278) target = $region24
      $region23: #{_lambda_.1} parent=11 // pred_region
        _
      $region24: #{_lambda_.1} parent=11 // pred_fallthru
        _
      // Predicated region
      $region25: #{_lambda_.1} parent=11 // pred_check
        %p281 = pneg %p126
      $region26: #{_lambda_.1} parent=11 // pred_check_branch
        %283 = sbr.rel (%p281) target = $region28
      $region27: #{_lambda_.1} parent=11 // pred_region
        _
      $region28: #{_lambda_.1} parent=11 // pred_fallthru
        _
      // Predicated region
      $region29: #{_lambda_.1} parent=11 // pred_check
        %p284 = pneg %p147
      $region30: #{_lambda_.1} parent=11 // pred_check_branch
        %286 = sbr.rel (%p284) target = $region32
      $region31: #{_lambda_.1} parent=11 // pred_region
        _
      $region32: #{_lambda_.1} parent=11 // pred_fallthru
        _
      // Predicated region
      $region33: #{_lambda_.1} parent=11 // pred_check
        %p287 = pneg %p168
      $region34: #{_lambda_.1} parent=11 // pred_check_branch
        %289 = sbr.rel (%p287) target = $region36
      $region35: #{_lambda_.1} parent=11 // pred_region
        _
      $region36: #{_lambda_.1} parent=11 // pred_fallthru
        _
      // Predicated region
      $region37: #{_lambda_.1} parent=11 // pred_check
        %p290 = pneg %p189
      $region38: #{_lambda_.1} parent=11 // pred_check_branch
        %292 = sbr.rel (%p290) target = $region40
      $region39: #{_lambda_.1} parent=11 // pred_region
        _
      $region40: #{_lambda_.1} parent=11 // pred_fallthru
        _
      // Predicated region
      $region41: #{_lambda_.1} parent=11 // pred_check
        %p293 = pneg %p210
      $region42: #{_lambda_.1} parent=11 // pred_check_branch
        %295 = sbr.rel (%p293) target = $region44
      $region43: #{_lambda_.1} parent=11 // pred_region
        _
      $region44: #{_lambda_.1} parent=11 // pred_fallthru
        _
      // Predicated region
      $region45: #{_lambda_.1} parent=11 // pred_check
        %p296 = pneg %p231
      $region46: #{_lambda_.1} parent=11 // pred_check_branch
        %298 = sbr.rel (%p296) target = $region48
      $region47: #{_lambda_.1} parent=11 // pred_region
        _
      $region48: #{_lambda_.1} parent=11 // pred_fallthru
        _
    $region12: #{_lambda_.1} parent=5 // pred_fallthru
      _
    %p299 = scmp.lt.s32.totalorder %s16, 2
    // Predicated region
    $region49: #{_lambda_.1} parent=5 // pred_check
      %p300 = pneg %p299
    $region50: #{_lambda_.1} parent=5 // pred_check_branch
      %302 = sbr.rel (%p300) target = $region52
    $region51: #{_lambda_.1} parent=5 // pred_region
      // Predicated region
      $region53: #{_lambda_.1} parent=51 // pred_check
        %p303 = pneg %p36
      $region54: #{_lambda_.1} parent=51 // pred_check_branch
        %305 = sbr.rel (%p303) target = $region56
      $region55: #{_lambda_.1} parent=51 // pred_region
        %p306 = scmp.lt.s32.totalorder %s16, 1
        %s307 = scalar_select %p306, %s16, 1
        %s308 = smul.addr %s307, 2
        %s309 = smul.addr %s308, 8
        %s310 = scalar_lea.vmem %s0, %s309
      $region56: #{_lambda_.1} parent=51 // pred_fallthru
        _
    $region52: #{_lambda_.1} parent=5 // pred_fallthru
      _
    %p311 = scmp.le.s32.totalorder 1, %s16
    %p312 = scmp.lt.s32.totalorder %s16, 3
    %p313 = pnand %p311, %p312
    %p314 = pneg %p313
    // Predicated region
    $region57: #{_lambda_.1} parent=5 // pred_check
      _
    $region58: #{_lambda_.1} parent=5 // pred_check_branch
      %316 = sbr.rel (%p313) target = $region60
    $region59: #{_lambda_.1} parent=5 // pred_region
      %s317 = ssub.s32 %s16, 1
      %p318 = scmp.lt.s32.totalorder %s21, 1
      %s319 = scalar_select %p318, %s21, 1
      %s320 = smul.addr %s319, 2
      %s321 = smul.addr %s320, 8
      %s322 = scalar_lea.vmem %s0, %s321
      %p323 = pneg %p42
      %p324 = pneg %p39
      %p325 = pneg %p63
      %p326 = pneg %p60
      %p327 = pneg %p84
      %p328 = pneg %p81
      %p329 = pneg %p105
      %p330 = pneg %p102
      %p331 = pneg %p126
      %p332 = pneg %p123
      %p333 = pneg %p147
      %p334 = pneg %p144
      %p335 = pneg %p168
      %p336 = pneg %p165
      %p337 = pneg %p189
      %p338 = pneg %p186
      %p339 = pneg %p210
      %p340 = pneg %p207
      %p341 = pneg %p231
      %p342 = pneg %p228
      %p343 = pneg %p257
      %p344 = pneg %p254
      %p345 = scmp.lt.s32.totalorder %s21, 1
      %s346 = scalar_select %p345, %s21, 1
      %s347 = smul.addr %s346, 8
      %s348 = scalar_lea.vmem %s10, %s347
      %p349 = scmp.lt.s32.totalorder %s21, 1
      %s350 = scalar_select %p349, %s21, 1
      %s351 = smul.addr %s350, 2
      %s352 = smul.addr %s351, 8
      %s353 = scalar_lea.vmem %s0, %s352
      %p354 = scmp.lt.s32.totalorder %s21, 1
      %s355 = scalar_select %p354, %s21, 1
      %s356 = smul.addr %s355, 8
      %s357 = scalar_lea.vmem %s10, %s356
      %v358 = vld [vmem:[%s353] sm:$0xff]
      %v359 = vld [vmem:[%s353 + $0x8] sm:$0xff]
      %v360 = vld [vmem:[%s1] sm:$0xff]
      %v361 = vld [vmem:[%s1 + $0x8] sm:$0xff]
      %v362 = vld [vmem:[%s1 + $0x10] sm:$0xff]
      %v363 = vld [vmem:[%s1 + $0x18] sm:$0xff]
      %v364 = vld [vmem:[%s1 + $0x20] sm:$0xff]
      %v365 = vld [vmem:[%s1 + $0x28] sm:$0xff]
      %v366 = vld [vmem:[%s1 + $0x30] sm:$0xff]
      %v367 = vld [vmem:[%s1 + $0x38] sm:$0xff]
      %v368 = vld [vmem:[%s1 + $0x40] sm:$0xff]
      %v369 = vld [vmem:[%s1 + $0x48] sm:$0xff]
      %v370 = vld [vmem:[%s1 + $0x50] sm:$0xff]
      %v371 = vld [vmem:[%s1 + $0x58] sm:$0xff]
      %v372 = vld [vmem:[%s1 + $0x60] sm:$0xff]
      %v373 = vld [vmem:[%s1 + $0x68] sm:$0xff]
      %v374 = vld [vmem:[%s1 + $0x70] sm:$0xff]
      %v375 = vld [vmem:[%s1 + $0x78] sm:$0xff]
      %v376 = vld [vmem:[%s1 + $0x80] sm:$0xff]
      %v377 = vld [vmem:[%s1 + $0x88] sm:$0xff]
      %v378 = vld [vmem:[%s1 + $0x90] sm:$0xff]
      %v379 = vld [vmem:[%s1 + $0x98] sm:$0xff]
      %v380 = vld [vmem:[%s1 + $0xa0] sm:$0xff]
      %v381 = vld [vmem:[%s1 + $0xa8] sm:$0xff]
      %v382 = vld [vmem:[%s1 + $0xb0] sm:$0xff]
      %v383 = vld [vmem:[%s1 + $0xb8] sm:$0xff]
      %v384 = vld [vmem:[%s2] sm:$0x1]
      %v386 = vlaneseq
      %v387 = vshrl.u32 %v386, 7
      %v388 = vsub.s32 0, %v387
      %v389 = vrot.slane %v384, %v388
      %vm391 = vcmask 523264
      %v393 = vsel %vm391, %v359, 0
      %395 = vmatprep.subr.mxu0 0.0
      %396 = vmatpush1.msra.mxu0 %v375
      %397 = vmatprep.subr.mxu0 0.0
      %398 = vmatpush1.msra.mxu0 %v374
      %399 = vmatprep.subr.mxu0 0.0
      %400 = vmatpush1.msra.mxu0 %v373
      %401 = vmatprep.subr.mxu0 0.0
      %402 = vmatpush1.msra.mxu0 %v372
      %403 = vmatprep.subr.mxu0 0.0
      %404 = vmatpush1.msra.mxu0 %v371
      %405 = vmatprep.subr.mxu0 0.0
      %406 = vmatpush1.msra.mxu0 %v370
      %407 = vmatprep.subr.mxu0 0.0
      %408 = vmatpush1.msra.mxu0 %v369
      %409 = vmatprep.subr.mxu0 0.0
      %410 = vmatpush1.msra.mxu0 %v368
      %411 = vmatprep.subr.mxu0 0.0
      %412 = vmatpush1.msra.mxu0 %v367
      %413 = vmatprep.subr.mxu0 0.0
      %414 = vmatpush1.msra.mxu0 %v366
      %415 = vmatprep.subr.mxu0 0.0
      %416 = vmatpush1.msra.mxu0 %v365
      %417 = vmatprep.subr.mxu0 0.0
      %418 = vmatpush1.msra.mxu0 %v364
      %419 = vmatprep.subr.mxu0 0.0
      %420 = vmatpush1.msra.mxu0 %v363
      %421 = vmatprep.subr.mxu0 0.0
      %422 = vmatpush1.msra.mxu0 %v362
      %423 = vmatprep.subr.mxu0 0.0
      %424 = vmatpush1.msra.mxu0 %v361
      %425 = vmatprep.subr.mxu0 0.0
      %426 = vmatpush1.msra.mxu0 %v360
      %427 = vmatprep.subr.mxu0 0.0
      %428 = vmatpush2.msra.mxu0 0.0
      %429 = vmatprep.subr.mxu0 0.0
      %430 = vmatpush2.msra.mxu0 0.0
      %431 = vmatprep.subr.mxu0 0.0
      %432 = vmatpush2.msra.mxu0 0.0
      %433 = vmatprep.subr.mxu0 0.0
      %434 = vmatpush2.msra.mxu0 0.0
      %435 = vmatprep.subr.mxu0 0.0
      %436 = vmatpush2.msra.mxu0 0.0
      %437 = vmatprep.subr.mxu0 0.0
      %438 = vmatpush2.msra.mxu0 0.0
      %439 = vmatprep.subr.mxu0 0.0
      %440 = vmatpush2.msra.mxu0 0.0
      %441 = vmatprep.subr.mxu0 0.0
      %442 = vmatpush2.msra.mxu0 0.0
      %443 = vmatprep.subr.mxu0 0.0
      %444 = vmatpush2.msra.mxu0 %v383
      %445 = vmatprep.subr.mxu0 0.0
      %446 = vmatpush2.msra.mxu0 %v382
      %447 = vmatprep.subr.mxu0 0.0
      %448 = vmatpush2.msra.mxu0 %v381
      %449 = vmatprep.subr.mxu0 0.0
      %450 = vmatpush2.msra.mxu0 %v380
      %451 = vmatprep.subr.mxu0 0.0
      %452 = vmatpush2.msra.mxu0 %v379
      %453 = vmatprep.subr.mxu0 0.0
      %454 = vmatpush2.msra.mxu0 %v378
      %455 = vmatprep.subr.mxu0 0.0
      %456 = vmatpush2.msra.mxu0 %v377
      %457 = vmatprep.subr.mxu0 0.0
      %458 = vmatpush2.msra.mxu0 %v376
      %459 = vmatprep.mubr.f32.mxu0 %v393
      %460 = vmatmul.mubr.f32.gmra.mxu0 %v358
      %v461 = vpop.f32.mrf.mxu0
      %v462 = vadd.f32 %v389, %v461
      %v463 = vpop.f32.mrf.mxu0
      %464 = vdwg.mxu0
      %v465 = vld [vmem:[%s3] sm:$0xff]
      %v466 = vld [vmem:[%s3 + $0x8] sm:$0xff]
      %v467 = vld [vmem:[%s3 + $0x10] sm:$0xff]
      %v468 = vld [vmem:[%s3 + $0x18] sm:$0xff]
      %v469 = vld [vmem:[%s4] sm:$0x1]
      %v471 = vlaneseq
      %v472 = vshrl.u32 %v471, 7
      %v473 = vsub.s32 0, %v472
      %v474 = vrot.slane %v469, %v473
      %vm476 = vcmask 261120
      %v478 = vsel %vm476, %v462, 0
      %480 = vmatprep.subr.mxu0 0.0
      %481 = vmatpush1.msra.mxu0 0.0
      %482 = vmatprep.subr.mxu0 0.0
      %483 = vmatpush1.msra.mxu0 0.0
      %484 = vmatprep.subr.mxu0 0.0
      %485 = vmatpush1.msra.mxu0 0.0
      %486 = vmatprep.subr.mxu0 0.0
      %487 = vmatpush1.msra.mxu0 0.0
      %488 = vmatprep.subr.mxu0 0.0
      %489 = vmatpush1.msra.mxu0 0.0
      %490 = vmatprep.subr.mxu0 0.0
      %491 = vmatpush1.msra.mxu0 0.0
      %492 = vmatprep.subr.mxu0 0.0
      %493 = vmatpush1.msra.mxu0 0.0
      %494 = vmatprep.subr.mxu0 0.0
      %495 = vmatpush1.msra.mxu0 0.0
      %496 = vmatprep.subr.mxu0 0.0
      %497 = vmatpush1.msra.mxu0 0.0
      %498 = vmatprep.subr.mxu0 0.0
      %499 = vmatpush1.msra.mxu0 0.0
      %500 = vmatprep.subr.mxu0 0.0
      %501 = vmatpush1.msra.mxu0 0.0
      %502 = vmatprep.subr.mxu0 0.0
      %503 = vmatpush1.msra.mxu0 0.0
      %504 = vmatprep.subr.mxu0 0.0
      %505 = vmatpush1.msra.mxu0 %v468
      %506 = vmatprep.subr.mxu0 0.0
      %507 = vmatpush1.msra.mxu0 %v467
      %508 = vmatprep.subr.mxu0 0.0
      %509 = vmatpush1.msra.mxu0 %v466
      %510 = vmatprep.subr.mxu0 0.0
      %511 = vmatpush1.msra.mxu0 %v465
      %512 = vmatprep.subr.mxu0 0.0
      %513 = vmatpush2.msra.mxu0 0.0
      %514 = vmatprep.subr.mxu0 0.0
      %515 = vmatpush2.msra.mxu0 0.0
      %516 = vmatprep.subr.mxu0 0.0
      %517 = vmatpush2.msra.mxu0 0.0
      %518 = vmatprep.subr.mxu0 0.0
      %519 = vmatpush2.msra.mxu0 0.0
      %520 = vmatprep.subr.mxu0 0.0
      %521 = vmatpush2.msra.mxu0 0.0
      %522 = vmatprep.subr.mxu0 0.0
      %523 = vmatpush2.msra.mxu0 0.0
      %524 = vmatprep.subr.mxu0 0.0
      %525 = vmatpush2.msra.mxu0 0.0
      %526 = vmatprep.subr.mxu0 0.0
      %527 = vmatpush2.msra.mxu0 0.0
      %528 = vmatprep.subr.mxu0 0.0
      %529 = vmatpush2.msra.mxu0 0.0
      %530 = vmatprep.subr.mxu0 0.0
      %531 = vmatpush2.msra.mxu0 0.0
      %532 = vmatprep.subr.mxu0 0.0
      %533 = vmatpush2.msra.mxu0 0.0
      %534 = vmatprep.subr.mxu0 0.0
      %535 = vmatpush2.msra.mxu0 0.0
      %536 = vmatprep.subr.mxu0 0.0
      %537 = vmatpush2.msra.mxu0 0.0
      %538 = vmatprep.subr.mxu0 0.0
      %539 = vmatpush2.msra.mxu0 0.0
      %540 = vmatprep.subr.mxu0 0.0
      %541 = vmatpush2.msra.mxu0 0.0
      %542 = vmatprep.subr.mxu0 0.0
      %543 = vmatpush2.msra.mxu0 0.0
      %544 = vmatprep.mubr.f32.mxu0 0.0
      %545 = vmatmul.mubr.f32.gmra.mxu0 %v478
      %v546 = vpop.f32.mrf.mxu0
      %v547 = vadd.f32 %v474, %v546
      %v548 = vpop.f32.mrf.mxu0
      %549 = vdwg.mxu0
      %v550 = vsub.f32 0.0, %v547
      %v551 = vmul.f32 %v550, 1.442695
      %v552 = vpow.pop %v551
      %v553 = vadd.f32 %v552, 1.0
      %v554 = vrcp.pop %v553
      %v555 = vmul.f32 1.0, %v554
      %v556 = vmul.f32 %v547, %v555
      %v557 = vld [vmem:[%s5] sm:$0xff]
      %v558 = vld [vmem:[%s5 + $0x8] sm:$0xff]
      %v559 = vld [vmem:[%s5 + $0x10] sm:$0xff]
      %v560 = vld [vmem:[%s5 + $0x18] sm:$0xff]
      %v561 = vld [vmem:[%s5 + $0x20] sm:$0xff]
      %v562 = vld [vmem:[%s5 + $0x28] sm:$0xff]
      %v563 = vld [vmem:[%s5 + $0x30] sm:$0xff]
      %v564 = vld [vmem:[%s5 + $0x38] sm:$0xff]
      %v565 = vld [vmem:[%s5 + $0x40] sm:$0xff]
      %v566 = vld [vmem:[%s5 + $0x48] sm:$0xff]
      %v567 = vld [vmem:[%s5 + $0x50] sm:$0xff]
      %v568 = vld [vmem:[%s5 + $0x58] sm:$0xff]
      %v569 = vld [vmem:[%s5 + $0x60] sm:$0xff]
      %v570 = vld [vmem:[%s5 + $0x68] sm:$0xff]
      %v571 = vld [vmem:[%s5 + $0x70] sm:$0xff]
      %v572 = vld [vmem:[%s5 + $0x78] sm:$0xff]
      %v573 = vld [vmem:[%s6] sm:$0x1]
      %v575 = vlaneseq
      %v576 = vshrl.u32 %v575, 7
      %v577 = vsub.s32 0, %v576
      %v578 = vrot.slane %v573, %v577
      %580 = vmatprep.subr.mxu0 0.0
      %581 = vmatpush1.msra.mxu0 %v572
      %582 = vmatprep.subr.mxu0 0.0
      %583 = vmatpush1.msra.mxu0 %v571
      %584 = vmatprep.subr.mxu0 0.0
      %585 = vmatpush1.msra.mxu0 %v570
      %586 = vmatprep.subr.mxu0 0.0
      %587 = vmatpush1.msra.mxu0 %v569
      %588 = vmatprep.subr.mxu0 0.0
      %589 = vmatpush1.msra.mxu0 %v568
      %590 = vmatprep.subr.mxu0 0.0
      %591 = vmatpush1.msra.mxu0 %v567
      %592 = vmatprep.subr.mxu0 0.0
      %593 = vmatpush1.msra.mxu0 %v566
      %594 = vmatprep.subr.mxu0 0.0
      %595 = vmatpush1.msra.mxu0 %v565
      %596 = vmatprep.subr.mxu0 0.0
      %597 = vmatpush1.msra.mxu0 %v564
      %598 = vmatprep.subr.mxu0 0.0
      %599 = vmatpush1.msra.mxu0 %v563
      %600 = vmatprep.subr.mxu0 0.0
      %601 = vmatpush1.msra.mxu0 %v562
      %602 = vmatprep.subr.mxu0 0.0
      %603 = vmatpush1.msra.mxu0 %v561
      %604 = vmatprep.subr.mxu0 0.0
      %605 = vmatpush1.msra.mxu0 %v560
      %606 = vmatprep.subr.mxu0 0.0
      %607 = vmatpush1.msra.mxu0 %v559
      %608 = vmatprep.subr.mxu0 0.0
      %609 = vmatpush1.msra.mxu0 %v558
      %610 = vmatprep.subr.mxu0 0.0
      %611 = vmatpush1.msra.mxu0 %v557
      %612 = vmatprep.subr.mxu0 0.0
      %613 = vmatpush2.msra.mxu0 0.0
      %614 = vmatprep.subr.mxu0 0.0
      %615 = vmatpush2.msra.mxu0 0.0
      %616 = vmatprep.subr.mxu0 0.0
      %617 = vmatpush2.msra.mxu0 0.0
      %618 = vmatprep.subr.mxu0 0.0
      %619 = vmatpush2.msra.mxu0 0.0
      %620 = vmatprep.subr.mxu0 0.0
      %621 = vmatpush2.msra.mxu0 0.0
      %622 = vmatprep.subr.mxu0 0.0
      %623 = vmatpush2.msra.mxu0 0.0
      %624 = vmatprep.subr.mxu0 0.0
      %625 = vmatpush2.msra.mxu0 0.0
      %626 = vmatprep.subr.mxu0 0.0
      %627 = vmatpush2.msra.mxu0 0.0
      %628 = vmatprep.subr.mxu0 0.0
      %629 = vmatpush2.msra.mxu0 0.0
      %630 = vmatprep.subr.mxu0 0.0
      %631 = vmatpush2.msra.mxu0 0.0
      %632 = vmatprep.subr.mxu0 0.0
      %633 = vmatpush2.msra.mxu0 0.0
      %634 = vmatprep.subr.mxu0 0.0
      %635 = vmatpush2.msra.mxu0 0.0
      %636 = vmatprep.subr.mxu0 0.0
      %637 = vmatpush2.msra.mxu0 0.0
      %638 = vmatprep.subr.mxu0 0.0
      %639 = vmatpush2.msra.mxu0 0.0
      %640 = vmatprep.subr.mxu0 0.0
      %641 = vmatpush2.msra.mxu0 0.0
      %642 = vmatprep.subr.mxu0 0.0
      %643 = vmatpush2.msra.mxu0 0.0
      %644 = vmatprep.mubr.f32.mxu0 0.0
      %645 = vmatmul.mubr.f32.gmra.mxu0 %v556
      %v646 = vpop.f32.mrf.mxu0
      %v647 = vadd.f32 %v578, %v646
      %v648 = vpop.f32.mrf.mxu0
      %649 = vdwg.mxu0
      %v650 = vsub.f32 0.0, %v647
      %v651 = vmul.f32 %v650, 1.442695
      %v652 = vpow.pop %v651
      %v653 = vadd.f32 %v652, 1.0
      %v654 = vrcp.pop %v653
      %v655 = vmul.f32 1.0, %v654
      %v656 = vmul.f32 %v647, %v655
      %v657 = vld [vmem:[%s7] sm:$0xff]
      %v658 = vld [vmem:[%s7 + $0x8] sm:$0xff]
      %v659 = vld [vmem:[%s7 + $0x10] sm:$0xff]
      %v660 = vld [vmem:[%s7 + $0x18] sm:$0xff]
      %v661 = vld [vmem:[%s8] sm:$0x1]
      %v663 = vlaneseq
      %v664 = vshrl.u32 %v663, 7
      %v665 = vsub.s32 0, %v664
      %v666 = vrot.slane %v661, %v665
      %v669 = vsel %vm476, %v656, 0
      %671 = vmatprep.subr.mxu0 0.0
      %672 = vmatpush1.msra.mxu0 0.0
      %673 = vmatprep.subr.mxu0 0.0
      %674 = vmatpush1.msra.mxu0 0.0
      %675 = vmatprep.subr.mxu0 0.0
      %676 = vmatpush1.msra.mxu0 0.0
      %677 = vmatprep.subr.mxu0 0.0
      %678 = vmatpush1.msra.mxu0 0.0
      %679 = vmatprep.subr.mxu0 0.0
      %680 = vmatpush1.msra.mxu0 0.0
      %681 = vmatprep.subr.mxu0 0.0
      %682 = vmatpush1.msra.mxu0 0.0
      %683 = vmatprep.subr.mxu0 0.0
      %684 = vmatpush1.msra.mxu0 0.0
      %685 = vmatprep.subr.mxu0 0.0
      %686 = vmatpush1.msra.mxu0 0.0
      %687 = vmatprep.subr.mxu0 0.0
      %688 = vmatpush1.msra.mxu0 0.0
      %689 = vmatprep.subr.mxu0 0.0
      %690 = vmatpush1.msra.mxu0 0.0
      %691 = vmatprep.subr.mxu0 0.0
      %692 = vmatpush1.msra.mxu0 0.0
      %693 = vmatprep.subr.mxu0 0.0
      %694 = vmatpush1.msra.mxu0 0.0
      %695 = vmatprep.subr.mxu0 0.0
      %696 = vmatpush1.msra.mxu0 %v660
      %697 = vmatprep.subr.mxu0 0.0
      %698 = vmatpush1.msra.mxu0 %v659
      %699 = vmatprep.subr.mxu0 0.0
      %700 = vmatpush1.msra.mxu0 %v658
      %701 = vmatprep.subr.mxu0 0.0
      %702 = vmatpush1.msra.mxu0 %v657
      %703 = vmatprep.subr.mxu0 0.0
      %704 = vmatpush2.msra.mxu0 0.0
      %705 = vmatprep.subr.mxu0 0.0
      %706 = vmatpush2.msra.mxu0 0.0
      %707 = vmatprep.subr.mxu0 0.0
      %708 = vmatpush2.msra.mxu0 0.0
      %709 = vmatprep.subr.mxu0 0.0
      %710 = vmatpush2.msra.mxu0 0.0
      %711 = vmatprep.subr.mxu0 0.0
      %712 = vmatpush2.msra.mxu0 0.0
      %713 = vmatprep.subr.mxu0 0.0
      %714 = vmatpush2.msra.mxu0 0.0
      %715 = vmatprep.subr.mxu0 0.0
      %716 = vmatpush2.msra.mxu0 0.0
      %717 = vmatprep.subr.mxu0 0.0
      %718 = vmatpush2.msra.mxu0 0.0
      %719 = vmatprep.subr.mxu0 0.0
      %720 = vmatpush2.msra.mxu0 0.0
      %721 = vmatprep.subr.mxu0 0.0
      %722 = vmatpush2.msra.mxu0 0.0
      %723 = vmatprep.subr.mxu0 0.0
      %724 = vmatpush2.msra.mxu0 0.0
      %725 = vmatprep.subr.mxu0 0.0
      %726 = vmatpush2.msra.mxu0 0.0
      %727 = vmatprep.subr.mxu0 0.0
      %728 = vmatpush2.msra.mxu0 0.0
      %729 = vmatprep.subr.mxu0 0.0
      %730 = vmatpush2.msra.mxu0 0.0
      %731 = vmatprep.subr.mxu0 0.0
      %732 = vmatpush2.msra.mxu0 0.0
      %733 = vmatprep.subr.mxu0 0.0
      %734 = vmatpush2.msra.mxu0 0.0
      %735 = vmatprep.mubr.f32.mxu0 0.0
      %736 = vmatmul.mubr.f32.gmra.mxu0 %v669
      %v737 = vpop.f32.mrf.mxu0
      %v738 = vadd.f32 %v666, %v737
      %v739 = vpop.f32.mrf.mxu0
      %740 = vdwg.mxu0
      %v741 = vlaneseq
      %v742 = vand.u32 %v741, 127
      %vm743 = vcmp.lt.s32.totalorder %v742, 3
      %vm744 = vcmp.eq.s32.totalorder %v742, 3
      %vm745 = vcmp.ge.s32.totalorder %v742, 11
      %vm746 = vcmp.lt.s32.totalorder %v742, 14
      %vm747 = vmand %vm745, %vm746
      %vm748 = vmor %vm744, %vm747
      %vm749 = vcmp.ge.s32.totalorder %v742, 4
      %vm750 = vcmp.lt.s32.totalorder %v742, 7
      %vm751 = vmand %vm749, %vm750
      %vm752 = vcmp.ge.s32.totalorder %v742, 7
      %vm753 = vcmp.lt.s32.totalorder %v742, 11
      %vm754 = vmand %vm752, %vm753
      %vm755 = vcmp.ge.s32.totalorder %v742, 32
      %vm756 = vcmp.lt.s32.totalorder %v742, 64
      %vm757 = vmand %vm755, %vm756
      %vm758 = vcmp.ge.s32.totalorder %v742, 64
      %vm759 = vcmp.lt.s32.totalorder %v742, 85
      %vm760 = vmand %vm758, %vm759
      %vm761 = vcmp.ge.s32.totalorder %v742, 85
      %vm762 = vcmp.lt.s32.totalorder %v742, 106
      %vm763 = vmand %vm761, %vm762
      %vm764 = vcmp.ge.s32.totalorder %v742, 106
      %vm765 = vcmp.lt.s32.totalorder %v742, 127
      %vm766 = vmand %vm764, %vm765
      %vm767 = vmor %vm757, %vm760
      %vm768 = vmor %vm767, %vm763
      %vm769 = vmor %vm768, %vm766
      %v770 = vsel %vm760, 1, 0
      %vm771 = vcmp.eq.s32.totalorder %v770, 1
      %v772 = vsel %vm771, %v738, -1e+30
      %773 = vmax.xlane.f32.xlu0 %v772
      %v774 = vpop.xlane.xlu0 %773
      %v775 = vsel %vm763, 1, 0
      %vm776 = vcmp.eq.s32.totalorder %v775, 1
      %v777 = vsel %vm776, %v738, -1e+30
      %778 = vmax.xlane.f32.xlu0 %v777
      %v779 = vpop.xlane.xlu0 %778
      %v780 = vsel %vm766, 1, 0
      %vm781 = vcmp.eq.s32.totalorder %v780, 1
      %v782 = vsel %vm781, %v738, -1e+30
      %783 = vmax.xlane.f32.xlu0 %v782
      %v784 = vpop.xlane.xlu0 %783
      %v785 = vsel %vm757, 1, 0
      %vm786 = vcmp.eq.s32.totalorder %v785, 1
      %v787 = vsel %vm786, %v738, -1e+30
      %788 = vmax.xlane.f32.xlu0 %v787
      %v789 = vpop.xlane.xlu0 %788
      %v790 = vsel %vm786, %v789, 0.0
      %v791 = vsel %vm781, %v784, %v790
      %v792 = vsel %vm776, %v779, %v791
      %v793 = vsel %vm771, %v774, %v792
      %v794 = vsub.f32 %v738, %v793
      %v795 = vsel %vm769, 1, 0
      %vm796 = vcmp.eq.s32.totalorder %v795, 1
      %v797 = vsel %vm796, %v794, -1e+30
      %v798 = vmul.f32 %v797, 1.442695
      %v799 = vpow.pop %v798
      %v800 = vld [vmem:[%s9] sm:$0xff]
      %v801 = vld [vmem:[%s9 + $0x8] sm:$0xff]
      %v802 = vld [vmem:[%s9 + $0x10] sm:$0xff]
      %v803 = vld [vmem:[%s9 + $0x18] sm:$0xff]
      %v804 = vld [vmem:[%s9 + $0x20] sm:$0xff]
      %v805 = vld [vmem:[%s9 + $0x28] sm:$0xff]
      %v806 = vld [vmem:[%s9 + $0x30] sm:$0xff]
      %v807 = vld [vmem:[%s9 + $0x38] sm:$0xff]
      %v808 = vld [vmem:[%s9 + $0x40] sm:$0xff]
      %v809 = vld [vmem:[%s9 + $0x48] sm:$0xff]
      %v810 = vld [vmem:[%s9 + $0x50] sm:$0xff]
      %v811 = vld [vmem:[%s9 + $0x58] sm:$0xff]
      %v812 = vld [vmem:[%s9 + $0x60] sm:$0xff]
      %v813 = vld [vmem:[%s9 + $0x68] sm:$0xff]
      %v814 = vld [vmem:[%s9 + $0x70] sm:$0xff]
      %v815 = vld [vmem:[%s9 + $0x78] sm:$0xff]
      %816 = vmatprep.subr.mxu0 0.0
      %817 = vmatpush1.msra.mxu0 %v815
      %818 = vmatprep.subr.mxu0 0.0
      %819 = vmatpush1.msra.mxu0 %v814
      %820 = vmatprep.subr.mxu0 0.0
      %821 = vmatpush1.msra.mxu0 %v813
      %822 = vmatprep.subr.mxu0 0.0
      %823 = vmatpush1.msra.mxu0 %v812
      %824 = vmatprep.subr.mxu0 0.0
      %825 = vmatpush1.msra.mxu0 %v811
      %826 = vmatprep.subr.mxu0 0.0
      %827 = vmatpush1.msra.mxu0 %v810
      %828 = vmatprep.subr.mxu0 0.0
      %829 = vmatpush1.msra.mxu0 %v809
      %830 = vmatprep.subr.mxu0 0.0
      %831 = vmatpush1.msra.mxu0 %v808
      %832 = vmatprep.subr.mxu0 0.0
      %833 = vmatpush1.msra.mxu0 %v807
      %834 = vmatprep.subr.mxu0 0.0
      %835 = vmatpush1.msra.mxu0 %v806
      %836 = vmatprep.subr.mxu0 0.0
      %837 = vmatpush1.msra.mxu0 %v805
      %838 = vmatprep.subr.mxu0 0.0
      %839 = vmatpush1.msra.mxu0 %v804
      %840 = vmatprep.subr.mxu0 0.0
      %841 = vmatpush1.msra.mxu0 %v803
      %842 = vmatprep.subr.mxu0 0.0
      %843 = vmatpush1.msra.mxu0 %v802
      %844 = vmatprep.subr.mxu0 0.0
      %845 = vmatpush1.msra.mxu0 %v801
      %846 = vmatprep.subr.mxu0 0.0
      %847 = vmatpush1.msra.mxu0 %v800
      %848 = vmatprep.subr.mxu0 0.0
      %849 = vmatpush2.msra.mxu0 0.0
      %850 = vmatprep.subr.mxu0 0.0
      %851 = vmatpush2.msra.mxu0 0.0
      %852 = vmatprep.subr.mxu0 0.0
      %853 = vmatpush2.msra.mxu0 0.0
      %854 = vmatprep.subr.mxu0 0.0
      %855 = vmatpush2.msra.mxu0 0.0
      %856 = vmatprep.subr.mxu0 0.0
      %857 = vmatpush2.msra.mxu0 0.0
      %858 = vmatprep.subr.mxu0 0.0
      %859 = vmatpush2.msra.mxu0 0.0
      %860 = vmatprep.subr.mxu0 0.0
      %861 = vmatpush2.msra.mxu0 0.0
      %862 = vmatprep.subr.mxu0 0.0
      %863 = vmatpush2.msra.mxu0 0.0
      %864 = vmatprep.subr.mxu0 0.0
      %865 = vmatpush2.msra.mxu0 0.0
      %866 = vmatprep.subr.mxu0 0.0
      %867 = vmatpush2.msra.mxu0 0.0
      %868 = vmatprep.subr.mxu0 0.0
      %869 = vmatpush2.msra.mxu0 0.0
      %870 = vmatprep.subr.mxu0 0.0
      %871 = vmatpush2.msra.mxu0 0.0
      %872 = vmatprep.subr.mxu0 0.0
      %873 = vmatpush2.msra.mxu0 0.0
      %874 = vmatprep.subr.mxu0 0.0
      %875 = vmatpush2.msra.mxu0 0.0
      %876 = vmatprep.subr.mxu0 0.0
      %877 = vmatpush2.msra.mxu0 0.0
      %878 = vmatprep.subr.mxu0 0.0
      %879 = vmatpush2.msra.mxu0 0.0
      %880 = vmatprep.mubr.f32.mxu0 0.0
      %881 = vmatmul.mubr.f32.gmra.mxu0 %v799
      %v882 = vpop.f32.mrf.mxu0
      %v883 = vadd.f32 0.0, %v882
      %v884 = vpop.f32.mrf.mxu0
      %885 = vdwg.mxu0
      %vm886 = vcmp.eq.s32.totalorder %v742, 0
      %v887 = vsel %vm771, %v799, 0.0
      %888 = vadd.xlane.f32.xlu0 %v887
      %v889 = vpop.xlane.xlu0 %888
      %vm890 = vcmp.eq.s32.totalorder %v742, 1
      %v891 = vsel %vm776, %v799, 0.0
      %892 = vadd.xlane.f32.xlu0 %v891
      %v893 = vpop.xlane.xlu0 %892
      %vm894 = vcmp.eq.s32.totalorder %v742, 2
      %v895 = vsel %vm781, %v799, 0.0
      %896 = vadd.xlane.f32.xlu0 %v895
      %v897 = vpop.xlane.xlu0 %896
      %v898 = vsel %vm894, 1, 0
      %vm899 = vcmp.eq.s32.totalorder %v898, 1
      %v900 = vsel %vm899, %v897, 1.0
      %v901 = vsel %vm890, 1, 0
      %vm902 = vcmp.eq.s32.totalorder %v901, 1
      %v903 = vsel %vm902, %v893, %v900
      %v904 = vsel %vm886, 1, 0
      %vm905 = vcmp.eq.s32.totalorder %v904, 1
      %v906 = vsel %vm905, %v889, %v903
      %v907 = vrcp.pop %v906
      %v908 = vmul.f32 %v883, %v907
      %v909 = vmul.f32 %v883, %v883
      %v910 = vsel %vm754, 1, 0
      %vm911 = vcmp.eq.s32.totalorder %v910, 1
      %v912 = vsel %vm911, %v909, 0.0
      %913 = vadd.xlane.f32.xlu0 %v912
      %v914 = vpop.xlane.xlu0 %913
      %v915 = vmax.f32 %v914, 1e-24
      %v916 = vrsqrt.pop %v915
      %v917 = vmul.f32 %v883, %v916
      %v918 = vsub.f32 0.0, %v738
      %v919 = vmul.f32 %v918, 1.442695
      %v920 = vpow.pop %v919
      %v921 = vadd.f32 %v920, 1.0
      %v922 = vrcp.pop %v921
      %v923 = vmax.f32 %v738, 0.0
      %v924 = vand.u32 2147483647, %v738
      %v925 = vsub.f32 0.0, %v924
      %v926 = vmul.f32 %v925, 1.442695
      %v927 = vpow.pop %v926
      %v928 = vadd.f32 %v927, 1.0
      %v929 = vlog2.pop %v928
      %v930 = vmul.f32 %v929, 0.6931472
      %v931 = vadd.f32 %v923, %v930
      %v932 = vmul.f32 %v931, 0.1
      %v933 = vsel %vm751, 1, 0
      %vm934 = vcmp.eq.s32.totalorder %v933, 1
      %v935 = vsel %vm934, %v932, 0.0
      %v936 = vsel %vm748, 1, 0
      %vm937 = vcmp.eq.s32.totalorder %v936, 1
      %v938 = vsel %vm937, %v922, %v935
      %v939 = vsel %vm911, %v917, %v938
      %v940 = vsel %vm743, 1, 0
      %vm941 = vcmp.eq.s32.totalorder %v940, 1
      %v942 = vsel %vm941, %v908, %v939
      %943 = vst [vmem:[%s357] sm:$0xff] %v942
      %p944 = scmp.lt.s32.totalorder %s21, 1
      %s945 = scalar_select %p944, %s21, 1
      %s946 = smul.addr %s945, 8
      %s947 = scalar_lea.vmem %s10, %s946
      // Predicated region
      $region61: #{_lambda_.1} parent=59 // pred_check
        %p948 = pneg %p254
      $region62: #{_lambda_.1} parent=59 // pred_check_branch
        %950 = sbr.rel (%p948) target = $region64
      $region63: #{_lambda_.1} parent=59 // pred_region
        _
      $region64: #{_lambda_.1} parent=59 // pred_fallthru
        _
    $region60: #{_lambda_.1} parent=5 // pred_fallthru
      _
    %p951 = scmp.le.s32.totalorder 2, %s16
    // Predicated region
    $region65: #{_lambda_.1} parent=5 // pred_check
      %p952 = pneg %p951
    $region66: #{_lambda_.1} parent=5 // pred_check_branch
      %954 = sbr.rel (%p952) target = $region68
    $region67: #{_lambda_.1} parent=5 // pred_region
      %s955 = ssub.s32 %s16, 2
      // Predicated region
      $region69: #{_lambda_.1} parent=67 // pred_check
        %p956 = pneg %p260
      $region70: #{_lambda_.1} parent=67 // pred_check_branch
        %958 = sbr.rel (%p956) target = $region72
      $region71: #{_lambda_.1} parent=67 // pred_region
        %p959 = scmp.lt.s32.totalorder %s22, 1
        %s960 = scalar_select %p959, %s22, 1
        %s961 = smul.addr %s960, 8
        %s962 = scalar_lea.vmem %s10, %s961
      $region72: #{_lambda_.1} parent=67 // pred_fallthru
        _
    $region68: #{_lambda_.1} parent=5 // pred_fallthru
      _
  $region6: #{_lambda_.1} parent=0 // loop_footer
    %s20 = sadd.s32 1, %s16
  $region7: #{_lambda_.1} parent=0 // loop_footer_branch
    %15 = sbr.rel target = $region3
  $region8: #{_lambda_.1} parent=0 // loop_exit
    _

</llo_original>
